<compile_context>
chip_gen: v7x
topology: tpu7x:2x2x1
jax: 0.10.0
libtpu: 0.0.40
codegen_flags: <defaults>
</compile_context>

<pallas_src>
import jax
import jax.numpy as jnp
from jax import lax
from jax.experimental import pallas as pl
from jax.experimental.pallas import tpu as pltpu

CPAD = 128  # lane-dense in-kernel channel width (multiple of 128)


# --------------------------- per-generation config ---------------------------
def _tpu_generation():
    try:
        kind = jax.devices()[0].device_kind.lower()
    except Exception:
        return "unknown"
    if "v5 lite" in kind or "v5e" in kind or "v5lite" in kind:
        return "v5e"
    if "v6" in kind:
        return "v6e"
    if "v7" in kind or "7x" in kind:
        return "v7x"
    return "unknown"


_GEN_CFG = {
    # max_rows: per-grid-step sublane-row cap (in-kernel live set ~5 KiB/row)
    # vmem:     scoped VMEM limit to request (None -> leave compiler default)
    # stack_taps: fold k taps into one K=k*128 MXU contraction (256-wide MXU on
    #             v6e/v7x); v5e prefers k accumulating K=128 dots
    # mm_dtype: MXU operand dtype (bf16 halves weight DMA/VMEM on v6e/v7x)
    "v7x": dict(max_rows=4096, vmem=52 * 2**20, stack_taps=True, mm_dtype=jnp.bfloat16),
    "v6e": dict(max_rows=16384, vmem=100 * 2**20, stack_taps=True, mm_dtype=jnp.bfloat16),
    "v5e": dict(max_rows=8192, vmem=100 * 2**20, stack_taps=False, mm_dtype=jnp.float32),
    "unknown": dict(max_rows=4096, vmem=None, stack_taps=True, mm_dtype=jnp.float32),
}


def _pick_grid_steps(N, L, gen, max_rows):
    """Pick the number of grid steps (batch split).  Prefer >=4 steps of
    ~512-2048 rows (pipeline overlap) under the VMEM row cap; only force an
    even split on v7x (2 TensorCores) -- on a single TC extra tiny steps are
    pure per-step overhead."""
    cands = [ns for ns in range(1, N + 1)
             if N % ns == 0 and (ns == 1 or ((N // ns) * L) % 8 == 0)]

    def score(ns):
        rows = (N // ns) * L
        s = 0.0
        if rows > max_rows:
            s -= 1e6                      # would blow the VMEM budget
        if ns >= 4:
            s += 10.0                     # enough steps for real prefetch overlap
        if 512 <= rows <= 2048:
            s += 8.0                      # measured HBM-roofline sweet spot
        elif rows >= 256:
            s += 4.0
        if gen == "v7x" and ns % 2 == 0:
            s += 2.0                      # keep both TensorCores busy
        if gen != "v7x" and ns >= 2 and rows < 256:
            s -= 3.0                      # serial grid: tiny tiles = pure overhead
        return s - 0.001 * ns             # tie-break: fewer steps

    return max(cands, key=score)


# ----------------------------- Pallas kernel --------------------------------
def _make_fused_kernel(layer_plan, k, L, bps, c_in0, c_last, cpad,
                       stack_taps, mm_dtype):
    """layer_plan: tuple of (dilation, has_downsample).  Each grid step sees an
    (R, c_in0) input tile, R = bps * L rows (bps batch elements folded onto the
    sublane axis, time-major), and writes an (R, c_last) output tile."""
    R = bps * L

    def kernel(*refs):
        x_ref, o_ref = refs[0], refs[-1]
        w_refs = refs[1:-1]

        # Hoisted causal masks: one (R, cpad) f32 mask per unique shift.  The
        # iota compare + lane broadcast is emitted once and reused by conv1 and
        # conv2 of every layer; the within-batch time index keeps folded batch
        # elements from leaking into each other through the sublane roll.
        t_idx = lax.broadcasted_iota(jnp.int32, (R, 1), 0) % L
        shifts = sorted({t * d for d, _ in layer_plan for t in range(1, k)})
        masks = {s: jnp.broadcast_to((t_idx >= s).astype(jnp.float32), (R, cpad))
                 for s in shifts}

        def causal_conv(x, w_list, b_ref, dilation):
            # out[l] = b + sum_t x[l - t*dilation] @ W[t]   (causal 'chomped' conv)
            c = x.shape[1]
            taps = [x]
            for t in range(1, k):                      # k tiny & static -> unrolled
                s = t * dilation
                xr = pltpu.roll(x, shift=s % R, axis=0)      # time roll on the XLU
                m = masks[s] if c == cpad else masks[s][:, :c]
                taps.append(xr * m)                          # causal mask (VPU mul)
            if len(w_list) == 1:      # tap-stacked: ONE K = k*c MXU contraction
                xs = taps[0] if k == 1 else jnp.concatenate(taps, axis=1)
                acc = jnp.dot(xs.astype(mm_dtype), w_list[0][...],
                              preferred_element_type=jnp.float32)
            else:                     # per-tap accumulating dots (v5e / narrow c)
                acc = jnp.dot(taps[0].astype(mm_dtype), w_list[0][...],
                              preferred_element_type=jnp.float32)
                for t in range(1, k):
                    acc = acc + jnp.dot(taps[t].astype(mm_dtype), w_list[t][...],
                                        preferred_element_type=jnp.float32)
            return acc + b_ref[...]

        h = x_ref[...].astype(jnp.float32)   # (R, c_in0) unpadded; stays in VMEM/vregs
        in_w, i = c_in0, 0
        for dilation, has_ds in layer_plan:
            n1 = 1 if (stack_taps and in_w == cpad) else k
            n2 = 1 if stack_taps else k
            w1, b1 = w_refs[i:i + n1], w_refs[i + n1]; i += n1 + 1
            w2, b2 = w_refs[i:i + n2], w_refs[i + n2]; i += n2 + 1
            h1 = jnp.maximum(causal_conv(h, w1, b1, dilation), 0.0)
            h2 = jnp.maximum(causal_conv(h1, w2, b2, dilation), 0.0)
            if has_ds:
                wd, bd = w_refs[i], w_refs[i + 1]; i += 2
                res = jnp.dot(h.astype(mm_dtype), wd[...],
                              preferred_element_type=jnp.float32) + bd[...]
            else:
                res = h              # only reachable when in_w == cpad (see wrapper)
            h = jnp.maximum(h2 + res, 0.0)
            in_w = cpad
        assert i == len(w_refs)      # trace-time sanity check

        # unpadded (R, c_last) store -> no padded HBM writeback
        o_ref[...] = h[:, :c_last] if c_last != cpad else h

    return kernel


# ------------------------- parameter construction ---------------------------
def init_tcn_params(key, num_inputs, num_channels, kernel_size):
    """Deterministic parameters, PyTorch Conv1d layout (Cout, Cin, K).
    weight_norm is a pure reparameterization (W = g * v/||v||, g=||v|| at init),
    so effective weights are plain normal(0, 0.01) tensors here."""
    params = []
    in_ch = num_inputs
    for out_ch in num_channels:
        key, k1, k2, k3, k4, k5, k6 = jax.random.split(key, 7)
        w1 = 0.01 * jax.random.normal(k1, (out_ch, in_ch, kernel_size), jnp.float32)
        b1 = 0.05 * jax.random.normal(k2, (out_ch,), jnp.float32)
        w2 = 0.01 * jax.random.normal(k3, (out_ch, out_ch, kernel_size), jnp.float32)
        b2 = 0.05 * jax.random.normal(k4, (out_ch,), jnp.float32)
        if in_ch != out_ch:
            wd = 0.01 * jax.random.normal(k5, (out_ch, in_ch, 1), jnp.float32)
            bd = 0.05 * jax.random.normal(k6, (out_ch,), jnp.float32)
        else:
            wd, bd = None, None
        params.append((w1, b1, w2, b2, wd, bd))
        in_ch = out_ch
    return params


def _prep_block_weights(bp, k, cpad, in_width, stack_taps, w_dtype):
    """PyTorch (Cout, Cin, K) conv weights -> kernel-side matmul weights.
    Tap-flipped so out[l] = sum_t shift(x, t*d) @ W[t]; Cin is padded to the
    kernel-side input width of that conv, Cout to cpad.  Zero padding keeps the
    padded output channels exactly zero through every layer."""
    w1, b1, w2, b2, wd, bd = bp

    def conv_w(w, cin_to, stack):
        cout, cin, kk = w.shape
        wt = jnp.transpose(jnp.flip(w, axis=2), (2, 1, 0))            # (K, Cin, Cout)
        wt = jnp.pad(wt, ((0, 0), (0, cin_to - cin), (0, cpad - cout)))
        if stack:
            return [wt.reshape(kk * cin_to, cpad).astype(w_dtype)]    # tap-major stack
        return [wt[t].astype(w_dtype) for t in range(kk)]             # per-tap matrices

    def bias(b):
        return jnp.pad(b, (0, cpad - b.shape[0])).reshape(1, cpad).astype(jnp.float32)

    out = conv_w(w1, in_width, stack_taps and in_width == cpad) + [bias(b1)]
    out += conv_w(w2, cpad, stack_taps) + [bias(b2)]
    if wd is not None:
        cout, cin, _ = wd.shape
        wdt = jnp.pad(wd[:, :, 0].T, ((0, in_width - cin), (0, cpad - cout)))
        out += [wdt.astype(w_dtype), bias(bd)]
    return out


# ------------------------------ public wrapper -------------------------------
def temporal_conv_net(x_ncw, params, kernel_size):
    """Forward pass matching TemporalConvNet.forward (dropout p=0 -> identity).
    x_ncw: (N, C, L) like PyTorch Conv1d."""
    N, c0, L = x_ncw.shape
    c_last = params[-1][0].shape[0]
    assert c0 <= CPAD and all(bp[0].shape[0] <= CPAD for bp in params)

    gen = _tpu_generation()
    cfg = _GEN_CFG[gen]
    stack_taps, mm_dtype = cfg["stack_taps"], cfg["mm_dtype"]

    # (N, C, L) -> (N*L, C): time on sublanes, real (unpadded) channels on lanes.
    x2d = jnp.transpose(x_ncw, (0, 2, 1)).astype(jnp.float32).reshape(N * L, c0)

    nsteps = _pick_grid_steps(N, L, gen, cfg["max_rows"])
    bps = N // nsteps
    R = bps * L
    # TODO(synk): time-axis tiling with a (k-1)*(2**num_layers - 1)-row halo for
    # the case where N is too small to split and N*L rows exceed the VMEM budget.

    layer_plan, flat_w = [], []
    in_w = c0
    for i, bp in enumerate(params):
        has_ds = bp[4] is not None
        flat_w += _prep_block_weights(bp, kernel_size, CPAD, in_w, stack_taps, mm_dtype)
        if not has_ds and in_w != CPAD:
            # Identity residual, but the incoming activation is narrower than the
            # in-kernel lane width: realize it as a padded-identity matmul so the
            # residual add stays a full-width (R, CPAD) op.
            eye = jnp.pad(jnp.eye(in_w, dtype=jnp.float32), ((0, 0), (0, CPAD - in_w)))
            flat_w += [eye.astype(mm_dtype), jnp.zeros((1, CPAD), jnp.float32)]
            has_ds = True
        layer_plan.append((2 ** i, has_ds))
        in_w = CPAD

    kernel = _make_fused_kernel(tuple(layer_plan), kernel_size, L, bps, c0,
                                c_last, CPAD, stack_taps, mm_dtype)

    def build(single_buffer_weights):
        # Weights use constant index maps -> DMA'd once across all grid steps.
        # Request single buffering for them so they don't double their VMEM
        # footprint (their block index never changes).
        if single_buffer_weights:
            w_specs = [pl.BlockSpec(w.shape, lambda g: (0, 0),
                                    pipeline_mode=pl.Buffered(1)) for w in flat_w]
        else:
            w_specs = [pl.BlockSpec(w.shape, lambda g: (0, 0)) for w in flat_w]
        cp_kwargs = dict(dimension_semantics=("parallel",))
        if cfg["vmem"] is not None:
            cp_kwargs["vmem_limit_bytes"] = cfg["vmem"]
        return pl.pallas_call(
            kernel,
            out_shape=jax.ShapeDtypeStruct((N * L, c_last), jnp.float32),
            grid=(nsteps,),
            in_specs=[pl.BlockSpec((R, c0), lambda g: (g, 0))] + w_specs,
            out_specs=pl.BlockSpec((R, c_last), lambda g: (g, 0)),
            compiler_params=pltpu.CompilerParams(**cp_kwargs),
        )

    try:
        out = build(True)(x2d, *flat_w)
    except Exception:
        # pipeline_mode / pl.Buffered(1) not supported by this jax/Mosaic build:
        # fall back to default double-buffered weight specs (same semantics).
        out = build(False)(x2d, *flat_w)

    return jnp.transpose(out.reshape(N, L, c_last), (0, 2, 1))   # back to (N, C, L)


# --------------------------- pure-JAX reference ------------------------------
def _ref_tcn(x_ncw, params, kernel_size):
    h = x_ncw.astype(jnp.float32)
    for i, (w1, b1, w2, b2, wd, bd) in enumerate(params):
        d = 2 ** i
        p = (kernel_size - 1) * d
        L = h.shape[2]

        def conv(inp, w, b, dil, pad):
            o = lax.conv_general_dilated(
                inp, w, window_strides=(1,), padding=[(pad, pad)],
                rhs_dilation=(dil,), dimension_numbers=("NCH", "OIH", "NCH"))
            return o + b[None, :, None]

        o = jnp.maximum(conv(h, w1, b1, d, p)[:, :, :L], 0.0)   # conv1+chomp+relu
        o = jnp.maximum(conv(o, w2, b2, d, p)[:, :, :L], 0.0)   # conv2+chomp+relu
        # dropout p=0.0 -> identity
        res = h if wd is None else conv(h, wd, bd, 1, 0)
        h = jnp.maximum(o + res, 0.0)
    return h


# ----------------------------------- main ------------------------------------
if __name__ == "__main__":
    # TemporalConvNet(num_inputs=4, num_channels=[8, 8], kernel_size=2, dropout=0.0)
    num_inputs = 4
    num_channels = [8, 8]
    kernel_size = 2
    N, L = 2, 16

    key = jax.random.PRNGKey(0)
    kx, kp = jax.random.split(key)
    x = jax.random.normal(kx, (N, num_inputs, L), jnp.float32)  # PyTorch NCW layout
    params = init_tcn_params(kp, num_inputs, num_channels, kernel_size)

    out = jax.block_until_ready(temporal_conv_net(x, params, kernel_size))
    ref = jax.block_until_ready(_ref_tcn(x, params, kernel_size))

    assert out.shape == (N, num_channels[-1], L), out.shape
    # bf16 MXU operands on v6e/v7x need a looser tolerance than the f32 path.
    tol = 1e-2 if _GEN_CFG[_tpu_generation()]["mm_dtype"] == jnp.bfloat16 else 1e-5
    err = float(jnp.max(jnp.abs(out - ref)))
    assert jnp.allclose(out, ref, atol=tol, rtol=tol), err

    print("KERNEL_OK")
</pallas_src>

<mosaic_0001>
module attributes {stable_mosaic.version = 11 : i64} {
  func.func @kernel(%arg0: i32, %arg1: memref<32x4xf32, #tpu.memory_space<vmem>>, %arg2: memref<4x128xf32, #tpu.memory_space<vmem>>, %arg3: memref<4x128xf32, #tpu.memory_space<vmem>>, %arg4: memref<1x128xf32, #tpu.memory_space<vmem>>, %arg5: memref<256x128xf32, #tpu.memory_space<vmem>>, %arg6: memref<1x128xf32, #tpu.memory_space<vmem>>, %arg7: memref<4x128xf32, #tpu.memory_space<vmem>>, %arg8: memref<1x128xf32, #tpu.memory_space<vmem>>, %arg9: memref<256x128xf32, #tpu.memory_space<vmem>>, %arg10: memref<1x128xf32, #tpu.memory_space<vmem>>, %arg11: memref<256x128xf32, #tpu.memory_space<vmem>>, %arg12: memref<1x128xf32, #tpu.memory_space<vmem>>, %arg13: memref<32x8xf32, #tpu.memory_space<vmem>>) attributes {dimension_semantics = [#tpu.dimension_semantics<parallel>], iteration_bounds = array<i64: 1>, scalar_prefetch = 0 : i64, scratch_operands = 0 : i64, tpu.core_type = #tpu.core_type<tc>, window_params = [{transform_indices = @transform_0, window_bounds = array<i64: 32, 4>}, {pipeline_mode = #tpu.pipeline_mode<synchronous>, transform_indices = @transform_1, window_bounds = array<i64: 4, 128>}, {pipeline_mode = #tpu.pipeline_mode<synchronous>, transform_indices = @transform_2, window_bounds = array<i64: 4, 128>}, {pipeline_mode = #tpu.pipeline_mode<synchronous>, transform_indices = @transform_3, window_bounds = array<i64: 1, 128>}, {pipeline_mode = #tpu.pipeline_mode<synchronous>, transform_indices = @transform_4, window_bounds = array<i64: 256, 128>}, {pipeline_mode = #tpu.pipeline_mode<synchronous>, transform_indices = @transform_5, window_bounds = array<i64: 1, 128>}, {pipeline_mode = #tpu.pipeline_mode<synchronous>, transform_indices = @transform_6, window_bounds = array<i64: 4, 128>}, {pipeline_mode = #tpu.pipeline_mode<synchronous>, transform_indices = @transform_7, window_bounds = array<i64: 1, 128>}, {pipeline_mode = #tpu.pipeline_mode<synchronous>, transform_indices = @transform_8, window_bounds = array<i64: 256, 128>}, {pipeline_mode = #tpu.pipeline_mode<synchronous>, transform_indices = @transform_9, window_bounds = array<i64: 1, 128>}, {pipeline_mode = #tpu.pipeline_mode<synchronous>, transform_indices = @transform_10, window_bounds = array<i64: 256, 128>}, {pipeline_mode = #tpu.pipeline_mode<synchronous>, transform_indices = @transform_11, window_bounds = array<i64: 1, 128>}, {transform_indices = @transform_12, window_bounds = array<i64: 32, 8>}]} {
    %0 = tpu.iota {dimensions = array<i32: 0>} : vector<32x1xi32>
    %c16_i32 = arith.constant 16 : i32
    %c0_i32 = arith.constant 0 : i32
    %1 = arith.cmpi eq, %c16_i32, %c0_i32 : i32
    %c1_i32 = arith.constant 1 : i32
    %2 = arith.select %1, %c1_i32, %c16_i32 : i32
    %3 = vector.broadcast %2 : i32 to vector<32x1xi32>
    %4 = arith.remsi %0, %3 : vector<32x1xi32>
    %c0_i32_0 = arith.constant 0 : i32
    %5 = vector.broadcast %c0_i32_0 : i32 to vector<32x1xi32>
    %6 = arith.cmpi ne, %4, %5 : vector<32x1xi32>
    %c0_i32_1 = arith.constant 0 : i32
    %7 = vector.broadcast %c0_i32_1 : i32 to vector<32x1xi32>
    %8 = arith.cmpi slt, %4, %7 : vector<32x1xi32>
    %c0_i32_2 = arith.constant 0 : i32
    %9 = arith.cmpi slt, %2, %c0_i32_2 : i32
    %10 = vector.broadcast %9 : i1 to vector<32x1xi1>
    %11 = vector.broadcast %10 : vector<32x1xi1> to vector<32x1xi1>
    %12 = arith.xori %8, %11 : vector<32x1xi1>
    %13 = arith.andi %12, %6 : vector<32x1xi1>
    %14 = vector.broadcast %2 : i32 to vector<32x1xi32>
    %15 = arith.addi %4, %14 : vector<32x1xi32>
    %16 = arith.select %13, %15, %4 : vector<32x1xi1>, vector<32x1xi32>
    %c1_i32_3 = arith.constant 1 : i32
    %17 = vector.broadcast %c1_i32_3 : i32 to vector<32x1xi32>
    %18 = arith.cmpi sge, %16, %17 : vector<32x1xi32>
    %19 = arith.extui %18 : vector<32x1xi1> to vector<32x1xi32>
    %20 = arith.sitofp %19 : vector<32x1xi32> to vector<32x1xf32>
    %21 = vector.shape_cast %20 : vector<32x1xf32> to vector<32x1xf32>
    %22 = vector.broadcast %21 : vector<32x1xf32> to vector<32x128xf32>
    %c2_i32 = arith.constant 2 : i32
    %23 = vector.broadcast %c2_i32 : i32 to vector<32x1xi32>
    %24 = arith.cmpi sge, %16, %23 : vector<32x1xi32>
    %25 = arith.extui %24 : vector<32x1xi1> to vector<32x1xi32>
    %26 = arith.sitofp %25 : vector<32x1xi32> to vector<32x1xf32>
    %27 = vector.shape_cast %26 : vector<32x1xf32> to vector<32x1xf32>
    %28 = vector.broadcast %27 : vector<32x1xf32> to vector<32x128xf32>
    %c0 = arith.constant 0 : index
    %c0_4 = arith.constant 0 : index
    %29 = vector.load %arg1[%c0, %c0_4] : memref<32x4xf32, #tpu.memory_space<vmem>>, vector<32x4xf32>
    %c1_i32_5 = arith.constant 1 : i32
    %30 = tpu.dynamic_rotate %29 by %c1_i32_5 dim 0 : vector<32x4xf32>, i32 -> vector<32x4xf32>
    %31 = vector.extract_strided_slice %22 {offsets = [0, 0], sizes = [32, 4], strides = [1, 1]} : vector<32x128xf32> to vector<32x4xf32>
    %32 = arith.mulf %30, %31 : vector<32x4xf32>
    %c0_6 = arith.constant 0 : index
    %c0_7 = arith.constant 0 : index
    %33 = vector.load %arg2[%c0_6, %c0_7] : memref<4x128xf32, #tpu.memory_space<vmem>>, vector<4x128xf32>
    %cst = arith.constant dense<0.000000e+00> : vector<32x128xf32>
    %34 = tpu.matmul %29, %33, %cst {dimension_numbers = #tpu.dot_dimension_numbers<[1], [0], [0], [1], [0, 0, 1, 1], [], []>} : vector<32x4xf32>, vector<4x128xf32>, vector<32x128xf32> -> vector<32x128xf32>
    %c0_8 = arith.constant 0 : index
    %c0_9 = arith.constant 0 : index
    %35 = vector.load %arg3[%c0_8, %c0_9] : memref<4x128xf32, #tpu.memory_space<vmem>>, vector<4x128xf32>
    %cst_10 = arith.constant dense<0.000000e+00> : vector<32x128xf32>
    %36 = tpu.matmul %32, %35, %cst_10 {dimension_numbers = #tpu.dot_dimension_numbers<[1], [0], [0], [1], [0, 0, 1, 1], [], []>} : vector<32x4xf32>, vector<4x128xf32>, vector<32x128xf32> -> vector<32x128xf32>
    %37 = arith.addf %34, %36 : vector<32x128xf32>
    %c0_11 = arith.constant 0 : index
    %c0_12 = arith.constant 0 : index
    %38 = vector.load %arg4[%c0_11, %c0_12] : memref<1x128xf32, #tpu.memory_space<vmem>>, vector<1x128xf32>
    %39 = vector.broadcast %38 : vector<1x128xf32> to vector<32x128xf32>
    %40 = arith.addf %37, %39 : vector<32x128xf32>
    %cst_13 = arith.constant 0.000000e+00 : f32
    %41 = vector.broadcast %cst_13 : f32 to vector<32x128xf32>
    %42 = arith.maximumf %40, %41 : vector<32x128xf32>
    %c1_i32_14 = arith.constant 1 : i32
    %43 = tpu.dynamic_rotate %42 by %c1_i32_14 dim 0 : vector<32x128xf32>, i32 -> vector<32x128xf32>
    %44 = arith.mulf %43, %22 : vector<32x128xf32>
    %45 = tpu.concatenate %42, %44 in 1 : vector<32x128xf32>, vector<32x128xf32> -> vector<32x256xf32>
    %c0_15 = arith.constant 0 : index
    %c0_16 = arith.constant 0 : index
    %46 = vector.load %arg5[%c0_15, %c0_16] : memref<256x128xf32, #tpu.memory_space<vmem>>, vector<256x128xf32>
    %cst_17 = arith.constant dense<0.000000e+00> : vector<32x128xf32>
    %47 = tpu.matmul %45, %46, %cst_17 {dimension_numbers = #tpu.dot_dimension_numbers<[1], [0], [0], [1], [0, 0, 1, 1], [], []>} : vector<32x256xf32>, vector<256x128xf32>, vector<32x128xf32> -> vector<32x128xf32>
    %c0_18 = arith.constant 0 : index
    %c0_19 = arith.constant 0 : index
    %48 = vector.load %arg6[%c0_18, %c0_19] : memref<1x128xf32, #tpu.memory_space<vmem>>, vector<1x128xf32>
    %49 = vector.broadcast %48 : vector<1x128xf32> to vector<32x128xf32>
    %50 = arith.addf %47, %49 : vector<32x128xf32>
    %cst_20 = arith.constant 0.000000e+00 : f32
    %51 = vector.broadcast %cst_20 : f32 to vector<32x128xf32>
    %52 = arith.maximumf %50, %51 : vector<32x128xf32>
    %c0_21 = arith.constant 0 : index
    %c0_22 = arith.constant 0 : index
    %53 = vector.load %arg7[%c0_21, %c0_22] : memref<4x128xf32, #tpu.memory_space<vmem>>, vector<4x128xf32>
    %cst_23 = arith.constant dense<0.000000e+00> : vector<32x128xf32>
    %54 = tpu.matmul %29, %53, %cst_23 {dimension_numbers = #tpu.dot_dimension_numbers<[1], [0], [0], [1], [0, 0, 1, 1], [], []>} : vector<32x4xf32>, vector<4x128xf32>, vector<32x128xf32> -> vector<32x128xf32>
    %c0_24 = arith.constant 0 : index
    %c0_25 = arith.constant 0 : index
    %55 = vector.load %arg8[%c0_24, %c0_25] : memref<1x128xf32, #tpu.memory_space<vmem>>, vector<1x128xf32>
    %56 = vector.broadcast %55 : vector<1x128xf32> to vector<32x128xf32>
    %57 = arith.addf %54, %56 : vector<32x128xf32>
    %58 = arith.addf %52, %57 : vector<32x128xf32>
    %cst_26 = arith.constant 0.000000e+00 : f32
    %59 = vector.broadcast %cst_26 : f32 to vector<32x128xf32>
    %60 = arith.maximumf %58, %59 : vector<32x128xf32>
    %c2_i32_27 = arith.constant 2 : i32
    %61 = tpu.dynamic_rotate %60 by %c2_i32_27 dim 0 : vector<32x128xf32>, i32 -> vector<32x128xf32>
    %62 = arith.mulf %61, %28 : vector<32x128xf32>
    %63 = tpu.concatenate %60, %62 in 1 : vector<32x128xf32>, vector<32x128xf32> -> vector<32x256xf32>
    %c0_28 = arith.constant 0 : index
    %c0_29 = arith.constant 0 : index
    %64 = vector.load %arg9[%c0_28, %c0_29] : memref<256x128xf32, #tpu.memory_space<vmem>>, vector<256x128xf32>
    %cst_30 = arith.constant dense<0.000000e+00> : vector<32x128xf32>
    %65 = tpu.matmul %63, %64, %cst_30 {dimension_numbers = #tpu.dot_dimension_numbers<[1], [0], [0], [1], [0, 0, 1, 1], [], []>} : vector<32x256xf32>, vector<256x128xf32>, vector<32x128xf32> -> vector<32x128xf32>
    %c0_31 = arith.constant 0 : index
    %c0_32 = arith.constant 0 : index
    %66 = vector.load %arg10[%c0_31, %c0_32] : memref<1x128xf32, #tpu.memory_space<vmem>>, vector<1x128xf32>
    %67 = vector.broadcast %66 : vector<1x128xf32> to vector<32x128xf32>
    %68 = arith.addf %65, %67 : vector<32x128xf32>
    %cst_33 = arith.constant 0.000000e+00 : f32
    %69 = vector.broadcast %cst_33 : f32 to vector<32x128xf32>
    %70 = arith.maximumf %68, %69 : vector<32x128xf32>
    %c2_i32_34 = arith.constant 2 : i32
    %71 = tpu.dynamic_rotate %70 by %c2_i32_34 dim 0 : vector<32x128xf32>, i32 -> vector<32x128xf32>
    %72 = arith.mulf %71, %28 : vector<32x128xf32>
    %73 = tpu.concatenate %70, %72 in 1 : vector<32x128xf32>, vector<32x128xf32> -> vector<32x256xf32>
    %c0_35 = arith.constant 0 : index
    %c0_36 = arith.constant 0 : index
    %74 = vector.load %arg11[%c0_35, %c0_36] : memref<256x128xf32, #tpu.memory_space<vmem>>, vector<256x128xf32>
    %cst_37 = arith.constant dense<0.000000e+00> : vector<32x128xf32>
    %75 = tpu.matmul %73, %74, %cst_37 {dimension_numbers = #tpu.dot_dimension_numbers<[1], [0], [0], [1], [0, 0, 1, 1], [], []>} : vector<32x256xf32>, vector<256x128xf32>, vector<32x128xf32> -> vector<32x128xf32>
    %c0_38 = arith.constant 0 : index
    %c0_39 = arith.constant 0 : index
    %76 = vector.load %arg12[%c0_38, %c0_39] : memref<1x128xf32, #tpu.memory_space<vmem>>, vector<1x128xf32>
    %77 = vector.broadcast %76 : vector<1x128xf32> to vector<32x128xf32>
    %78 = arith.addf %75, %77 : vector<32x128xf32>
    %cst_40 = arith.constant 0.000000e+00 : f32
    %79 = vector.broadcast %cst_40 : f32 to vector<32x128xf32>
    %80 = arith.maximumf %78, %79 : vector<32x128xf32>
    %81 = arith.addf %80, %60 : vector<32x128xf32>
    %cst_41 = arith.constant 0.000000e+00 : f32
    %82 = vector.broadcast %cst_41 : f32 to vector<32x128xf32>
    %83 = arith.maximumf %81, %82 : vector<32x128xf32>
    %84 = vector.extract_strided_slice %83 {offsets = [0, 0], sizes = [32, 8], strides = [1, 1]} : vector<32x128xf32> to vector<32x8xf32>
    %c0_42 = arith.constant 0 : index
    %c0_43 = arith.constant 0 : index
    %85 = vector.load %arg13[%c0_42, %c0_43] : memref<32x8xf32, #tpu.memory_space<vmem>>, vector<32x8xf32>
    tpu.vector_store %arg13[%c0_42, %c0_43], %84 {strides = array<i32>} : memref<32x8xf32, #tpu.memory_space<vmem>>, vector<32x8xf32>,
    return
  }
  func.func @transform_0(%arg0: i32) -> (i32, i32) {
    %c0_i32 = arith.constant 0 : i32
    %c0_i32_0 = arith.constant 0 : i32
    return %arg0, %c0_i32 : i32, i32
  }
  func.func @transform_1(%arg0: i32) -> (i32, i32) {
    %c0_i32 = arith.constant 0 : i32
    %c0_i32_0 = arith.constant 0 : i32
    %c0_i32_1 = arith.constant 0 : i32
    return %c0_i32, %c0_i32_0 : i32, i32
  }
  func.func @transform_2(%arg0: i32) -> (i32, i32) {
    %c0_i32 = arith.constant 0 : i32
    %c0_i32_0 = arith.constant 0 : i32
    %c0_i32_1 = arith.constant 0 : i32
    return %c0_i32, %c0_i32_0 : i32, i32
  }
  func.func @transform_3(%arg0: i32) -> (i32, i32) {
    %c0_i32 = arith.constant 0 : i32
    %c0_i32_0 = arith.constant 0 : i32
    %c0_i32_1 = arith.constant 0 : i32
    return %c0_i32, %c0_i32_0 : i32, i32
  }
  func.func @transform_4(%arg0: i32) -> (i32, i32) {
    %c0_i32 = arith.constant 0 : i32
    %c0_i32_0 = arith.constant 0 : i32
    %c0_i32_1 = arith.constant 0 : i32
    return %c0_i32, %c0_i32_0 : i32, i32
  }
  func.func @transform_5(%arg0: i32) -> (i32, i32) {
    %c0_i32 = arith.constant 0 : i32
    %c0_i32_0 = arith.constant 0 : i32
    %c0_i32_1 = arith.constant 0 : i32
    return %c0_i32, %c0_i32_0 : i32, i32
  }
  func.func @transform_6(%arg0: i32) -> (i32, i32) {
    %c0_i32 = arith.constant 0 : i32
    %c0_i32_0 = arith.constant 0 : i32
    %c0_i32_1 = arith.constant 0 : i32
    return %c0_i32, %c0_i32_0 : i32, i32
  }
  func.func @transform_7(%arg0: i32) -> (i32, i32) {
    %c0_i32 = arith.constant 0 : i32
    %c0_i32_0 = arith.constant 0 : i32
    %c0_i32_1 = arith.constant 0 : i32
    return %c0_i32, %c0_i32_0 : i32, i32
  }
  func.func @transform_8(%arg0: i32) -> (i32, i32) {
    %c0_i32 = arith.constant 0 : i32
    %c0_i32_0 = arith.constant 0 : i32
    %c0_i32_1 = arith.constant 0 : i32
    return %c0_i32, %c0_i32_0 : i32, i32
  }
  func.func @transform_9(%arg0: i32) -> (i32, i32) {
    %c0_i32 = arith.constant 0 : i32
    %c0_i32_0 = arith.constant 0 : i32
    %c0_i32_1 = arith.constant 0 : i32
    return %c0_i32, %c0_i32_0 : i32, i32
  }
  func.func @transform_10(%arg0: i32) -> (i32, i32) {
    %c0_i32 = arith.constant 0 : i32
    %c0_i32_0 = arith.constant 0 : i32
    %c0_i32_1 = arith.constant 0 : i32
    return %c0_i32, %c0_i32_0 : i32, i32
  }
  func.func @transform_11(%arg0: i32) -> (i32, i32) {
    %c0_i32 = arith.constant 0 : i32
    %c0_i32_0 = arith.constant 0 : i32
    %c0_i32_1 = arith.constant 0 : i32
    return %c0_i32, %c0_i32_0 : i32, i32
  }
  func.func @transform_12(%arg0: i32) -> (i32, i32) {
    %c0_i32 = arith.constant 0 : i32
    %c0_i32_0 = arith.constant 0 : i32
    return %arg0, %c0_i32 : i32, i32
  }
}

module attributes {stable_mosaic.version = 11 : i64} {
  func.func @kernel(%arg0: i32, %arg1: memref<32x4xf32, #tpu.memory_space<vmem>>, %arg2: memref<4x128xf32, #tpu.memory_space<vmem>>, %arg3: memref<4x128xf32, #tpu.memory_space<vmem>>, %arg4: memref<1x128xf32, #tpu.memory_space<vmem>>, %arg5: memref<256x128xf32, #tpu.memory_space<vmem>>, %arg6: memref<1x128xf32, #tpu.memory_space<vmem>>, %arg7: memref<4x128xf32, #tpu.memory_space<vmem>>, %arg8: memref<1x128xf32, #tpu.memory_space<vmem>>, %arg9: memref<256x128xf32, #tpu.memory_space<vmem>>, %arg10: memref<1x128xf32, #tpu.memory_space<vmem>>, %arg11: memref<256x128xf32, #tpu.memory_space<vmem>>, %arg12: memref<1x128xf32, #tpu.memory_space<vmem>>, %arg13: memref<32x8xf32, #tpu.memory_space<vmem>>) attributes {dimension_semantics = [#tpu.dimension_semantics<parallel>], iteration_bounds = array<i64: 1>, scalar_prefetch = 0 : i64, scratch_operands = 0 : i64, tpu.core_type = #tpu.core_type<tc>, window_params = [{transform_indices = @transform_0, window_bounds = array<i64: 32, 4>}, {pipeline_mode = #tpu.pipeline_mode<synchronous>, transform_indices = @transform_1, window_bounds = array<i64: 4, 128>}, {pipeline_mode = #tpu.pipeline_mode<synchronous>, transform_indices = @transform_2, window_bounds = array<i64: 4, 128>}, {pipeline_mode = #tpu.pipeline_mode<synchronous>, transform_indices = @transform_3, window_bounds = array<i64: 1, 128>}, {pipeline_mode = #tpu.pipeline_mode<synchronous>, transform_indices = @transform_4, window_bounds = array<i64: 256, 128>}, {pipeline_mode = #tpu.pipeline_mode<synchronous>, transform_indices = @transform_5, window_bounds = array<i64: 1, 128>}, {pipeline_mode = #tpu.pipeline_mode<synchronous>, transform_indices = @transform_6, window_bounds = array<i64: 4, 128>}, {pipeline_mode = #tpu.pipeline_mode<synchronous>, transform_indices = @transform_7, window_bounds = array<i64: 1, 128>}, {pipeline_mode = #tpu.pipeline_mode<synchronous>, transform_indices = @transform_8, window_bounds = array<i64: 256, 128>}, {pipeline_mode = #tpu.pipeline_mode<synchronous>, transform_indices = @transform_9, window_bounds = array<i64: 1, 128>}, {pipeline_mode = #tpu.pipeline_mode<synchronous>, transform_indices = @transform_10, window_bounds = array<i64: 256, 128>}, {pipeline_mode = #tpu.pipeline_mode<synchronous>, transform_indices = @transform_11, window_bounds = array<i64: 1, 128>}, {transform_indices = @transform_12, window_bounds = array<i64: 32, 8>}]} {
    %0 = tpu.iota {dimensions = array<i32: 0>} : vector<32x1xi32>
    %c16_i32 = arith.constant 16 : i32
    %c0_i32 = arith.constant 0 : i32
    %1 = arith.cmpi eq, %c16_i32, %c0_i32 : i32
    %c1_i32 = arith.constant 1 : i32
    %2 = arith.select %1, %c1_i32, %c16_i32 : i32
    %3 = vector.broadcast %2 : i32 to vector<32x1xi32>
    %4 = arith.remsi %0, %3 : vector<32x1xi32>
    %c0_i32_0 = arith.constant 0 : i32
    %5 = vector.broadcast %c0_i32_0 : i32 to vector<32x1xi32>
    %6 = arith.cmpi ne, %4, %5 : vector<32x1xi32>
    %c0_i32_1 = arith.constant 0 : i32
    %7 = vector.broadcast %c0_i32_1 : i32 to vector<32x1xi32>
    %8 = arith.cmpi slt, %4, %7 : vector<32x1xi32>
    %c0_i32_2 = arith.constant 0 : i32
    %9 = arith.cmpi slt, %2, %c0_i32_2 : i32
    %10 = vector.broadcast %9 : i1 to vector<32x1xi1>
    %11 = vector.broadcast %10 : vector<32x1xi1> to vector<32x1xi1>
    %12 = arith.xori %8, %11 : vector<32x1xi1>
    %13 = arith.andi %12, %6 : vector<32x1xi1>
    %14 = vector.broadcast %2 : i32 to vector<32x1xi32>
    %15 = arith.addi %4, %14 : vector<32x1xi32>
    %16 = arith.select %13, %15, %4 : vector<32x1xi1>, vector<32x1xi32>
    %c1_i32_3 = arith.constant 1 : i32
    %17 = vector.broadcast %c1_i32_3 : i32 to vector<32x1xi32>
    %18 = arith.cmpi sge, %16, %17 : vector<32x1xi32>
    %19 = arith.extui %18 : vector<32x1xi1> to vector<32x1xi32>
    %20 = arith.sitofp %19 : vector<32x1xi32> to vector<32x1xf32>
    %21 = vector.shape_cast %20 : vector<32x1xf32> to vector<32x1xf32>
    %22 = vector.broadcast %21 : vector<32x1xf32> to vector<32x128xf32>
    %c2_i32 = arith.constant 2 : i32
    %23 = vector.broadcast %c2_i32 : i32 to vector<32x1xi32>
    %24 = arith.cmpi sge, %16, %23 : vector<32x1xi32>
    %25 = arith.extui %24 : vector<32x1xi1> to vector<32x1xi32>
    %26 = arith.sitofp %25 : vector<32x1xi32> to vector<32x1xf32>
    %27 = vector.shape_cast %26 : vector<32x1xf32> to vector<32x1xf32>
    %28 = vector.broadcast %27 : vector<32x1xf32> to vector<32x128xf32>
    %c0 = arith.constant 0 : index
    %c0_4 = arith.constant 0 : index
    %29 = vector.load %arg1[%c0, %c0_4] : memref<32x4xf32, #tpu.memory_space<vmem>>, vector<32x4xf32>
    %c1_i32_5 = arith.constant 1 : i32
    %30 = tpu.dynamic_rotate %29 by %c1_i32_5 dim 0 : vector<32x4xf32>, i32 -> vector<32x4xf32>
    %31 = vector.extract_strided_slice %22 {offsets = [0, 0], sizes = [32, 4], strides = [1, 1]} : vector<32x128xf32> to vector<32x4xf32>
    %32 = arith.mulf %30, %31 : vector<32x4xf32>
    %c0_6 = arith.constant 0 : index
    %c0_7 = arith.constant 0 : index
    %33 = vector.load %arg2[%c0_6, %c0_7] : memref<4x128xf32, #tpu.memory_space<vmem>>, vector<4x128xf32>
    %cst = arith.constant dense<0.000000e+00> : vector<32x128xf32>
    %34 = tpu.matmul %29, %33, %cst {dimension_numbers = #tpu.dot_dimension_numbers<[1], [0], [0], [1], [0, 0, 1, 1], [], []>} : vector<32x4xf32>, vector<4x128xf32>, vector<32x128xf32> -> vector<32x128xf32>
    %c0_8 = arith.constant 0 : index
    %c0_9 = arith.constant 0 : index
    %35 = vector.load %arg3[%c0_8, %c0_9] : memref<4x128xf32, #tpu.memory_space<vmem>>, vector<4x128xf32>
    %cst_10 = arith.constant dense<0.000000e+00> : vector<32x128xf32>
    %36 = tpu.matmul %32, %35, %cst_10 {dimension_numbers = #tpu.dot_dimension_numbers<[1], [0], [0], [1], [0, 0, 1, 1], [], []>} : vector<32x4xf32>, vector<4x128xf32>, vector<32x128xf32> -> vector<32x128xf32>
    %37 = arith.addf %34, %36 : vector<32x128xf32>
    %c0_11 = arith.constant 0 : index
    %c0_12 = arith.constant 0 : index
    %38 = vector.load %arg4[%c0_11, %c0_12] : memref<1x128xf32, #tpu.memory_space<vmem>>, vector<1x128xf32>
    %39 = vector.broadcast %38 : vector<1x128xf32> to vector<32x128xf32>
    %40 = arith.addf %37, %39 : vector<32x128xf32>
    %cst_13 = arith.constant 0.000000e+00 : f32
    %41 = vector.broadcast %cst_13 : f32 to vector<32x128xf32>
    %42 = arith.maximumf %40, %41 : vector<32x128xf32>
    %c1_i32_14 = arith.constant 1 : i32
    %43 = tpu.dynamic_rotate %42 by %c1_i32_14 dim 0 : vector<32x128xf32>, i32 -> vector<32x128xf32>
    %44 = arith.mulf %43, %22 : vector<32x128xf32>
    %45 = tpu.concatenate %42, %44 in 1 : vector<32x128xf32>, vector<32x128xf32> -> vector<32x256xf32>
    %c0_15 = arith.constant 0 : index
    %c0_16 = arith.constant 0 : index
    %46 = vector.load %arg5[%c0_15, %c0_16] : memref<256x128xf32, #tpu.memory_space<vmem>>, vector<256x128xf32>
    %cst_17 = arith.constant dense<0.000000e+00> : vector<32x128xf32>
    %47 = tpu.matmul %45, %46, %cst_17 {dimension_numbers = #tpu.dot_dimension_numbers<[1], [0], [0], [1], [0, 0, 1, 1], [], []>} : vector<32x256xf32>, vector<256x128xf32>, vector<32x128xf32> -> vector<32x128xf32>
    %c0_18 = arith.constant 0 : index
    %c0_19 = arith.constant 0 : index
    %48 = vector.load %arg6[%c0_18, %c0_19] : memref<1x128xf32, #tpu.memory_space<vmem>>, vector<1x128xf32>
    %49 = vector.broadcast %48 : vector<1x128xf32> to vector<32x128xf32>
    %50 = arith.addf %47, %49 : vector<32x128xf32>
    %cst_20 = arith.constant 0.000000e+00 : f32
    %51 = vector.broadcast %cst_20 : f32 to vector<32x128xf32>
    %52 = arith.maximumf %50, %51 : vector<32x128xf32>
    %c0_21 = arith.constant 0 : index
    %c0_22 = arith.constant 0 : index
    %53 = vector.load %arg7[%c0_21, %c0_22] : memref<4x128xf32, #tpu.memory_space<vmem>>, vector<4x128xf32>
    %cst_23 = arith.constant dense<0.000000e+00> : vector<32x128xf32>
    %54 = tpu.matmul %29, %53, %cst_23 {dimension_numbers = #tpu.dot_dimension_numbers<[1], [0], [0], [1], [0, 0, 1, 1], [], []>} : vector<32x4xf32>, vector<4x128xf32>, vector<32x128xf32> -> vector<32x128xf32>
    %c0_24 = arith.constant 0 : index
    %c0_25 = arith.constant 0 : index
    %55 = vector.load %arg8[%c0_24, %c0_25] : memref<1x128xf32, #tpu.memory_space<vmem>>, vector<1x128xf32>
    %56 = vector.broadcast %55 : vector<1x128xf32> to vector<32x128xf32>
    %57 = arith.addf %54, %56 : vector<32x128xf32>
    %58 = arith.addf %52, %57 : vector<32x128xf32>
    %cst_26 = arith.constant 0.000000e+00 : f32
    %59 = vector.broadcast %cst_26 : f32 to vector<32x128xf32>
    %60 = arith.maximumf %58, %59 : vector<32x128xf32>
    %c2_i32_27 = arith.constant 2 : i32
    %61 = tpu.dynamic_rotate %60 by %c2_i32_27 dim 0 : vector<32x128xf32>, i32 -> vector<32x128xf32>
    %62 = arith.mulf %61, %28 : vector<32x128xf32>
    %63 = tpu.concatenate %60, %62 in 1 : vector<32x128xf32>, vector<32x128xf32> -> vector<32x256xf32>
    %c0_28 = arith.constant 0 : index
    %c0_29 = arith.constant 0 : index
    %64 = vector.load %arg9[%c0_28, %c0_29] : memref<256x128xf32, #tpu.memory_space<vmem>>, vector<256x128xf32>
    %cst_30 = arith.constant dense<0.000000e+00> : vector<32x128xf32>
    %65 = tpu.matmul %63, %64, %cst_30 {dimension_numbers = #tpu.dot_dimension_numbers<[1], [0], [0], [1], [0, 0, 1, 1], [], []>} : vector<32x256xf32>, vector<256x128xf32>, vector<32x128xf32> -> vector<32x128xf32>
    %c0_31 = arith.constant 0 : index
    %c0_32 = arith.constant 0 : index
    %66 = vector.load %arg10[%c0_31, %c0_32] : memref<1x128xf32, #tpu.memory_space<vmem>>, vector<1x128xf32>
    %67 = vector.broadcast %66 : vector<1x128xf32> to vector<32x128xf32>
    %68 = arith.addf %65, %67 : vector<32x128xf32>
    %cst_33 = arith.constant 0.000000e+00 : f32
    %69 = vector.broadcast %cst_33 : f32 to vector<32x128xf32>
    %70 = arith.maximumf %68, %69 : vector<32x128xf32>
    %c2_i32_34 = arith.constant 2 : i32
    %71 = tpu.dynamic_rotate %70 by %c2_i32_34 dim 0 : vector<32x128xf32>, i32 -> vector<32x128xf32>
    %72 = arith.mulf %71, %28 : vector<32x128xf32>
    %73 = tpu.concatenate %70, %72 in 1 : vector<32x128xf32>, vector<32x128xf32> -> vector<32x256xf32>
    %c0_35 = arith.constant 0 : index
    %c0_36 = arith.constant 0 : index
    %74 = vector.load %arg11[%c0_35, %c0_36] : memref<256x128xf32, #tpu.memory_space<vmem>>, vector<256x128xf32>
    %cst_37 = arith.constant dense<0.000000e+00> : vector<32x128xf32>
    %75 = tpu.matmul %73, %74, %cst_37 {dimension_numbers = #tpu.dot_dimension_numbers<[1], [0], [0], [1], [0, 0, 1, 1], [], []>} : vector<32x256xf32>, vector<256x128xf32>, vector<32x128xf32> -> vector<32x128xf32>
    %c0_38 = arith.constant 0 : index
    %c0_39 = arith.constant 0 : index
    %76 = vector.load %arg12[%c0_38, %c0_39] : memref<1x128xf32, #tpu.memory_space<vmem>>, vector<1x128xf32>
    %77 = vector.broadcast %76 : vector<1x128xf32> to vector<32x128xf32>
    %78 = arith.addf %75, %77 : vector<32x128xf32>
    %cst_40 = arith.constant 0.000000e+00 : f32
    %79 = vector.broadcast %cst_40 : f32 to vector<32x128xf32>
    %80 = arith.maximumf %78, %79 : vector<32x128xf32>
    %81 = arith.addf %80, %60 : vector<32x128xf32>
    %cst_41 = arith.constant 0.000000e+00 : f32
    %82 = vector.broadcast %cst_41 : f32 to vector<32x128xf32>
    %83 = arith.maximumf %81, %82 : vector<32x128xf32>
    %84 = vector.extract_strided_slice %83 {offsets = [0, 0], sizes = [32, 8], strides = [1, 1]} : vector<32x128xf32> to vector<32x8xf32>
    %c0_42 = arith.constant 0 : index
    %c0_43 = arith.constant 0 : index
    %85 = vector.load %arg13[%c0_42, %c0_43] : memref<32x8xf32, #tpu.memory_space<vmem>>, vector<32x8xf32>
    tpu.vector_store %arg13[%c0_42, %c0_43], %84 {strides = array<i32>} : memref<32x8xf32, #tpu.memory_space<vmem>>, vector<32x8xf32>,
    return
  }
  func.func @transform_0(%arg0: i32) -> (i32, i32) {
    %c0_i32 = arith.constant 0 : i32
    %c0_i32_0 = arith.constant 0 : i32
    return %arg0, %c0_i32 : i32, i32
  }
  func.func @transform_1(%arg0: i32) -> (i32, i32) {
    %c0_i32 = arith.constant 0 : i32
    %c0_i32_0 = arith.constant 0 : i32
    %c0_i32_1 = arith.constant 0 : i32
    return %c0_i32, %c0_i32_0 : i32, i32
  }
  func.func @transform_2(%arg0: i32) -> (i32, i32) {
    %c0_i32 = arith.constant 0 : i32
    %c0_i32_0 = arith.constant 0 : i32
    %c0_i32_1 = arith.constant 0 : i32
    return %c0_i32, %c0_i32_0 : i32, i32
  }
  func.func @transform_3(%arg0: i32) -> (i32, i32) {
    %c0_i32 = arith.constant 0 : i32
    %c0_i32_0 = arith.constant 0 : i32
    %c0_i32_1 = arith.constant 0 : i32
    return %c0_i32, %c0_i32_0 : i32, i32
  }
  func.func @transform_4(%arg0: i32) -> (i32, i32) {
    %c0_i32 = arith.constant 0 : i32
    %c0_i32_0 = arith.constant 0 : i32
    %c0_i32_1 = arith.constant 0 : i32
    return %c0_i32, %c0_i32_0 : i32, i32
  }
  func.func @transform_5(%arg0: i32) -> (i32, i32) {
    %c0_i32 = arith.constant 0 : i32
    %c0_i32_0 = arith.constant 0 : i32
    %c0_i32_1 = arith.constant 0 : i32
    return %c0_i32, %c0_i32_0 : i32, i32
  }
  func.func @transform_6(%arg0: i32) -> (i32, i32) {
    %c0_i32 = arith.constant 0 : i32
    %c0_i32_0 = arith.constant 0 : i32
    %c0_i32_1 = arith.constant 0 : i32
    return %c0_i32, %c0_i32_0 : i32, i32
  }
  func.func @transform_7(%arg0: i32) -> (i32, i32) {
    %c0_i32 = arith.constant 0 : i32
    %c0_i32_0 = arith.constant 0 : i32
    %c0_i32_1 = arith.constant 0 : i32
    return %c0_i32, %c0_i32_0 : i32, i32
  }
  func.func @transform_8(%arg0: i32) -> (i32, i32) {
    %c0_i32 = arith.constant 0 : i32
    %c0_i32_0 = arith.constant 0 : i32
    %c0_i32_1 = arith.constant 0 : i32
    return %c0_i32, %c0_i32_0 : i32, i32
  }
  func.func @transform_9(%arg0: i32) -> (i32, i32) {
    %c0_i32 = arith.constant 0 : i32
    %c0_i32_0 = arith.constant 0 : i32
    %c0_i32_1 = arith.constant 0 : i32
    return %c0_i32, %c0_i32_0 : i32, i32
  }
  func.func @transform_10(%arg0: i32) -> (i32, i32) {
    %c0_i32 = arith.constant 0 : i32
    %c0_i32_0 = arith.constant 0 : i32
    %c0_i32_1 = arith.constant 0 : i32
    return %c0_i32, %c0_i32_0 : i32, i32
  }
  func.func @transform_11(%arg0: i32) -> (i32, i32) {
    %c0_i32 = arith.constant 0 : i32
    %c0_i32_0 = arith.constant 0 : i32
    %c0_i32_1 = arith.constant 0 : i32
    return %c0_i32, %c0_i32_0 : i32, i32
  }
  func.func @transform_12(%arg0: i32) -> (i32, i32) {
    %c0_i32 = arith.constant 0 : i32
    %c0_i32_0 = arith.constant 0 : i32
    return %arg0, %c0_i32 : i32, i32
  }
}

</mosaic_0001>

<llo_original>
// kernel: tpu_custom_call.1
$region0: #{tpu_custom_call.1}
  #allocation0 [shape = 'u32[]', space=smem, size = 0x4, offset = 0x4, fixed_abs, tag = 'smem constant byte address 0x4 - core index']
  #allocation1 [shape = 'u32[144,128]{1,0:T(1,128)}', space=vmem, size = 0x12000, scoped, tag = 'internal scratch']
  %s0 = inlined_call_operand.vmem [shape: f32[32,4], index: 0, kind: input, shape index: {}]
  %s1 = inlined_call_operand.vmem [shape: f32[4,128], index: 1, kind: input, shape index: {}]
  %s2 = inlined_call_operand.vmem [shape: f32[4,128], index: 2, kind: input, shape index: {}]
  %s3 = inlined_call_operand.vmem [shape: f32[1,128], index: 3, kind: input, shape index: {}]
  %s4 = inlined_call_operand.hbm [shape: f32[256,128], index: 4, kind: input, shape index: {}]
  %s5 = inlined_call_operand.vmem [shape: f32[1,128], index: 5, kind: input, shape index: {}]
  %s6 = inlined_call_operand.vmem [shape: f32[4,128], index: 6, kind: input, shape index: {}]
  %s7 = inlined_call_operand.vmem [shape: f32[1,128], index: 7, kind: input, shape index: {}]
  %s8 = inlined_call_operand.hbm [shape: f32[256,128], index: 8, kind: input, shape index: {}]
  %s9 = inlined_call_operand.vmem [shape: f32[1,128], index: 9, kind: input, shape index: {}]
  %s10 = inlined_call_operand.hbm [shape: f32[256,128], index: 10, kind: input, shape index: {}]
  %s11 = inlined_call_operand.vmem [shape: f32[1,128], index: 11, kind: input, shape index: {}]
  %s12 = inlined_call_operand.vmem [shape: f32[32,8], index: 12, kind: output, shape index: {}]
  %s13 = sld [smem:[#allocation0]]
  $region70: #{tpu_custom_call.1} parent=0
    _
  %s15 = ssub.s32 1, %s13
  %s16 = scalar_select 0, %s15, %s13
  $region1: #{tpu_custom_call.1} parent=0
    #allocation2 [shape = 'u8[131072]{0}', space=vmem, size = 0x20000, scoped, tag = 'input window, operand 4, single buffered']
    #allocation3 [shape = 's32[1]{0}', space=sflag, size = 0x4, scoped, tag = 'scoped memory for tpu_custom_call.1']
    #allocation4 [shape = 'u8[131072]{0}', space=vmem, size = 0x20000, scoped, tag = 'input window, operand 8, single buffered']
    #allocation5 [shape = 's32[1]{0}', space=sflag, size = 0x4, scoped, tag = 'scoped memory for tpu_custom_call.1']
    #allocation6 [shape = 'u8[131072]{0}', space=vmem, size = 0x20000, scoped, tag = 'input window, operand 10, single buffered']
    %17 = vsyncpa [#allocation3], 0
    %18 = vsyncpa [#allocation5], 0
    // Predicated region
    $region2: #{tpu_custom_call.1} parent=1 // pred_check
      _
    $region3: #{tpu_custom_call.1} parent=1 // pred_check_branch
      %20 = sbr.rel (0) target = $region5
    $region4: #{tpu_custom_call.1} parent=1 // pred_region
      _
    $region5: #{tpu_custom_call.1} parent=1 // pred_fallthru
      _
    // Predicated region
    $region6: #{tpu_custom_call.1} parent=1 // pred_check
      _
    $region7: #{tpu_custom_call.1} parent=1 // pred_check_branch
      %22 = sbr.rel (0) target = $region9
    $region8: #{tpu_custom_call.1} parent=1 // pred_region
      _
    $region9: #{tpu_custom_call.1} parent=1 // pred_fallthru
      _
    // Predicated region
    $region10: #{tpu_custom_call.1} parent=1 // pred_check
      _
    $region11: #{tpu_custom_call.1} parent=1 // pred_check_branch
      %24 = sbr.rel (0) target = $region13
    $region12: #{tpu_custom_call.1} parent=1 // pred_region
      _
    $region13: #{tpu_custom_call.1} parent=1 // pred_fallthru
      _
    // Predicated region
    $region14: #{tpu_custom_call.1} parent=1 // pred_check
      _
    $region15: #{tpu_custom_call.1} parent=1 // pred_check_branch
      %26 = sbr.rel (0) target = $region17
    $region16: #{tpu_custom_call.1} parent=1 // pred_region
      _
    $region17: #{tpu_custom_call.1} parent=1 // pred_fallthru
      _
    // Predicated region
    $region18: #{tpu_custom_call.1} parent=1 // pred_check
      _
    $region19: #{tpu_custom_call.1} parent=1 // pred_check_branch
      %28 = sbr.rel (0) target = $region21
    $region20: #{tpu_custom_call.1} parent=1 // pred_region
      %s30 = ssub.s32 4096, 4096
      %31 = vsyncadd [#allocation3], %s30
      %s32 = sshll.u32 [#allocation2], 4
      %s33 = int_to_ptr.vmem [resolvable:$true] %s32
      %38 = dma.hbm_to_vmem [thread:$0]  %s4, 4096, %s33, [#allocation3], 128, 128, 8
    $region21: #{tpu_custom_call.1} parent=1 // pred_fallthru
      _
    // Predicated region
    $region22: #{tpu_custom_call.1} parent=1 // pred_check
      _
    $region23: #{tpu_custom_call.1} parent=1 // pred_check_branch
      %40 = sbr.rel (0) target = $region25
    $region24: #{tpu_custom_call.1} parent=1 // pred_region
      _
    $region25: #{tpu_custom_call.1} parent=1 // pred_fallthru
      _
    // Predicated region
    $region26: #{tpu_custom_call.1} parent=1 // pred_check
      _
    $region27: #{tpu_custom_call.1} parent=1 // pred_check_branch
      %42 = sbr.rel (0) target = $region29
    $region28: #{tpu_custom_call.1} parent=1 // pred_region
      _
    $region29: #{tpu_custom_call.1} parent=1 // pred_fallthru
      _
    // Predicated region
    $region30: #{tpu_custom_call.1} parent=1 // pred_check
      _
    $region31: #{tpu_custom_call.1} parent=1 // pred_check_branch
      %44 = sbr.rel (0) target = $region33
    $region32: #{tpu_custom_call.1} parent=1 // pred_region
      _
    $region33: #{tpu_custom_call.1} parent=1 // pred_fallthru
      _
    // Predicated region
    $region34: #{tpu_custom_call.1} parent=1 // pred_check
      _
    $region35: #{tpu_custom_call.1} parent=1 // pred_check_branch
      %46 = sbr.rel (0) target = $region37
    $region36: #{tpu_custom_call.1} parent=1 // pred_region
      %s48 = ssub.s32 4096, 4096
      %49 = vsyncadd [#allocation5], %s48
      %s50 = sshll.u32 [#allocation4], 4
      %s51 = int_to_ptr.vmem [resolvable:$true] %s50
      %56 = dma.hbm_to_vmem [thread:$0]  %s8, 4096, %s51, [#allocation5], 128, 128, 8
    $region37: #{tpu_custom_call.1} parent=1 // pred_fallthru
      _
    // Predicated region
    $region38: #{tpu_custom_call.1} parent=1 // pred_check
      _
    $region39: #{tpu_custom_call.1} parent=1 // pred_check_branch
      %58 = sbr.rel (0) target = $region41
    $region40: #{tpu_custom_call.1} parent=1 // pred_region
      _
    $region41: #{tpu_custom_call.1} parent=1 // pred_fallthru
      _
    // Predicated region
    $region42: #{tpu_custom_call.1} parent=1 // pred_check
      _
    $region43: #{tpu_custom_call.1} parent=1 // pred_check_branch
      %60 = sbr.rel (0) target = $region45
    $region44: #{tpu_custom_call.1} parent=1 // pred_region
      %s62 = ssub.s32 4096, 4096
      %63 = vsyncadd [#allocation5], %s62
      %s64 = sshll.u32 [#allocation6], 4
      %s65 = int_to_ptr.vmem [resolvable:$true] %s64
      %70 = dma.hbm_to_vmem [thread:$0]  %s10, 4096, %s65, [#allocation5], 128, 128, 8
    $region45: #{tpu_custom_call.1} parent=1 // pred_fallthru
      _
    // Predicated region
    $region46: #{tpu_custom_call.1} parent=1 // pred_check
      _
    $region47: #{tpu_custom_call.1} parent=1 // pred_check_branch
      %72 = sbr.rel (0) target = $region49
    $region48: #{tpu_custom_call.1} parent=1 // pred_region
      _
    $region49: #{tpu_custom_call.1} parent=1 // pred_fallthru
      _
    // Predicated region
    $region50: #{tpu_custom_call.1} parent=1 // pred_check
      _
    $region51: #{tpu_custom_call.1} parent=1 // pred_check_branch
      %74 = sbr.rel (0) target = $region53
    $region52: #{tpu_custom_call.1} parent=1 // pred_region
      %75 = dma.done [#allocation3], 4096
    $region53: #{tpu_custom_call.1} parent=1 // pred_fallthru
      _
    // Predicated region
    $region54: #{tpu_custom_call.1} parent=1 // pred_check
      _
    $region55: #{tpu_custom_call.1} parent=1 // pred_check_branch
      %77 = sbr.rel (0) target = $region57
    $region56: #{tpu_custom_call.1} parent=1 // pred_region
      %78 = dma.done [#allocation5], 4096
    $region57: #{tpu_custom_call.1} parent=1 // pred_fallthru
      _
    // Predicated region
    $region58: #{tpu_custom_call.1} parent=1 // pred_check
      _
    $region59: #{tpu_custom_call.1} parent=1 // pred_check_branch
      %80 = sbr.rel (0) target = $region61
    $region60: #{tpu_custom_call.1} parent=1 // pred_region
      %81 = dma.done [#allocation5], 4096
    $region61: #{tpu_custom_call.1} parent=1 // pred_fallthru
      _
    %v82 = vlaneseq
    %v83 = vshrl.u32 %v82, 7
    %v84 = vadd.s32 %v83, 8
    %v85 = vadd.s32 %v83, 16
    %v86 = vadd.s32 %v83, 24
    %vm87 = vcmp.lt.s32.totalorder %v83, 0
    %v88 = vsub.s32 0, %v83
    %v89 = vsel %vm87, %v88, %v83
    %v90 = vshrl.u32 %v89, 4
    %v91 = vand.u32 %v89, 15
    %v92 = vsub.s32 0, %v91
    %v93 = vsel %vm87, %v92, %v91
    %vm94 = vcmp.lt.s32.totalorder %v84, 0
    %v95 = vsub.s32 0, %v84
    %v96 = vsel %vm94, %v95, %v84
    %v97 = vshrl.u32 %v96, 4
    %v98 = vand.u32 %v96, 15
    %v99 = vsub.s32 0, %v98
    %v100 = vsel %vm94, %v99, %v98
    %vm101 = vcmp.lt.s32.totalorder %v85, 0
    %v102 = vsub.s32 0, %v85
    %v103 = vsel %vm101, %v102, %v85
    %v104 = vshrl.u32 %v103, 4
    %v105 = vand.u32 %v103, 15
    %v106 = vsub.s32 0, %v105
    %v107 = vsel %vm101, %v106, %v105
    %vm108 = vcmp.lt.s32.totalorder %v86, 0
    %v109 = vsub.s32 0, %v86
    %v110 = vsel %vm108, %v109, %v86
    %v111 = vshrl.u32 %v110, 4
    %v112 = vand.u32 %v110, 15
    %v113 = vsub.s32 0, %v112
    %v114 = vsel %vm108, %v113, %v112
    %vm115 = vcmp.ne.s32.totalorder %v93, 0
    %vm116 = vcmp.ne.s32.totalorder %v100, 0
    %vm117 = vcmp.ne.s32.totalorder %v107, 0
    %vm118 = vcmp.ne.s32.totalorder %v114, 0
    %vm119 = vcmp.lt.s32.totalorder %v93, 0
    %vm120 = vcmp.lt.s32.totalorder %v100, 0
    %vm121 = vcmp.lt.s32.totalorder %v107, 0
    %vm122 = vcmp.lt.s32.totalorder %v114, 0
    %vm123 = vmand %vm119, %vm115
    %vm124 = vmand %vm120, %vm116
    %vm125 = vmand %vm121, %vm117
    %vm126 = vmand %vm122, %vm118
    %v127 = vadd.s32 %v93, 16
    %v128 = vadd.s32 %v100, 16
    %v129 = vadd.s32 %v107, 16
    %v130 = vadd.s32 %v114, 16
    %v131 = vsel %vm123, %v127, %v93
    %v132 = vsel %vm124, %v128, %v100
    %v133 = vsel %vm125, %v129, %v107
    %v134 = vsel %vm126, %v130, %v114
    %vm135 = vcmp.ge.s32.totalorder %v131, 1
    %vm136 = vcmp.ge.s32.totalorder %v132, 1
    %vm137 = vcmp.ge.s32.totalorder %v133, 1
    %vm138 = vcmp.ge.s32.totalorder %v134, 1
    %v139 = vsel %vm135, 1, 0
    %v140 = vsel %vm136, 1, 0
    %v141 = vsel %vm137, 1, 0
    %v142 = vsel %vm138, 1, 0
    %v143 = vcvt.s32.f32 %v139
    %v144 = vcvt.s32.f32 %v140
    %v145 = vcvt.s32.f32 %v141
    %v146 = vcvt.s32.f32 %v142
    %vm147 = vcmp.ge.s32.totalorder %v131, 2
    %vm148 = vcmp.ge.s32.totalorder %v132, 2
    %vm149 = vcmp.ge.s32.totalorder %v133, 2
    %vm150 = vcmp.ge.s32.totalorder %v134, 2
    %v151 = vsel %vm147, 1, 0
    %v152 = vsel %vm148, 1, 0
    %v153 = vsel %vm149, 1, 0
    %v154 = vsel %vm150, 1, 0
    %v155 = vcvt.s32.f32 %v151
    %v156 = vcvt.s32.f32 %v152
    %v157 = vcvt.s32.f32 %v153
    %v158 = vcvt.s32.f32 %v154
    %v159 = vld [vmem:[%s0] sm:$0xff]
    %v160 = vld [vmem:[%s0 + $0x8] sm:$0xff]
    %v161 = vld [vmem:[%s0 + $0x10] sm:$0xff]
    %v162 = vld [vmem:[%s0 + $0x18] sm:$0xff]
    %v163 = vrot.slane %v159, 7
    %v164 = vrot.slane %v160, 7
    %v165 = vrot.slane %v161, 7
    %v166 = vrot.slane %v162, 7
    %vm167 = vcmp.lt.s32.totalorder %v83, 1
    %v168 = vsel %vm167, %v165, %v166
    %v169 = vsel %vm167, %v164, %v165
    %v170 = vsel %vm167, %v163, %v164
    %v171 = vsel %vm167, %v166, %v163
    %v172 = vmul.f32 %v171, %v143
    %v173 = vmul.f32 %v170, %v144
    %v174 = vmul.f32 %v169, %v145
    %v175 = vmul.f32 %v168, %v146
    %v176 = vld [vmem:[%s1] sm:$0xf]
    %v177 = vld [vmem:[%s2] sm:$0xf]
    %vm178 = vcmask 31744
    %v180 = vsel %vm178, %v172, 0
    %v183 = vsel %vm178, %v173, 0
    %v186 = vsel %vm178, %v174, 0
    %v189 = vsel %vm178, %v175, 0
    %vm191 = vcmask 1043456
    %v193 = vsel %vm191, %v177, 0
    %195 = vmatprep.subr.mxu0 0.0
    %196 = vmatpush1.msra.mxu0 %v193
    %197 = vmatprep.subr.mxu0 0.0
    %198 = vmatpush1.msra.mxu0 0.0
    %199 = vmatprep.subr.mxu0 0.0
    %200 = vmatpush1.msra.mxu0 0.0
    %201 = vmatprep.subr.mxu0 0.0
    %202 = vmatpush1.msra.mxu0 0.0
    %203 = vmatprep.subr.mxu0 0.0
    %204 = vmatpush1.msra.mxu0 0.0
    %205 = vmatprep.subr.mxu0 0.0
    %206 = vmatpush1.msra.mxu0 0.0
    %207 = vmatprep.subr.mxu0 0.0
    %208 = vmatpush1.msra.mxu0 0.0
    %209 = vmatprep.subr.mxu0 0.0
    %210 = vmatpush1.msra.mxu0 0.0
    %211 = vmatprep.subr.mxu0 0.0
    %212 = vmatpush1.msra.mxu0 0.0
    %213 = vmatprep.subr.mxu0 0.0
    %214 = vmatpush1.msra.mxu0 0.0
    %215 = vmatprep.subr.mxu0 0.0
    %216 = vmatpush1.msra.mxu0 0.0
    %217 = vmatprep.subr.mxu0 0.0
    %218 = vmatpush1.msra.mxu0 0.0
    %219 = vmatprep.subr.mxu0 0.0
    %220 = vmatpush1.msra.mxu0 0.0
    %221 = vmatprep.subr.mxu0 0.0
    %222 = vmatpush1.msra.mxu0 0.0
    %223 = vmatprep.subr.mxu0 0.0
    %224 = vmatpush1.msra.mxu0 0.0
    %225 = vmatprep.subr.mxu0 0.0
    %226 = vmatpush1.msra.mxu0 0.0
    %227 = vmatprep.subr.mxu0 0.0
    %228 = vmatpush1.msra.mxu0 0.0
    %229 = vmatprep.subr.mxu0 0.0
    %230 = vmatpush1.msra.mxu0 0.0
    %231 = vmatprep.subr.mxu0 0.0
    %232 = vmatpush1.msra.mxu0 0.0
    %233 = vmatprep.subr.mxu0 0.0
    %234 = vmatpush1.msra.mxu0 0.0
    %235 = vmatprep.subr.mxu0 0.0
    %236 = vmatpush1.msra.mxu0 0.0
    %237 = vmatprep.subr.mxu0 0.0
    %238 = vmatpush1.msra.mxu0 0.0
    %239 = vmatprep.subr.mxu0 0.0
    %240 = vmatpush1.msra.mxu0 0.0
    %241 = vmatprep.subr.mxu0 0.0
    %242 = vmatpush1.msra.mxu0 0.0
    %243 = vmatprep.subr.mxu0 0.0
    %244 = vmatpush1.msra.mxu0 0.0
    %245 = vmatprep.subr.mxu0 0.0
    %246 = vmatpush1.msra.mxu0 0.0
    %247 = vmatprep.subr.mxu0 0.0
    %248 = vmatpush1.msra.mxu0 0.0
    %249 = vmatprep.subr.mxu0 0.0
    %250 = vmatpush1.msra.mxu0 0.0
    %251 = vmatprep.subr.mxu0 0.0
    %252 = vmatpush1.msra.mxu0 0.0
    %253 = vmatprep.subr.mxu0 0.0
    %254 = vmatpush1.msra.mxu0 0.0
    %255 = vmatprep.subr.mxu0 0.0
    %256 = vmatpush1.msra.mxu0 0.0
    %257 = vmatprep.subr.mxu0 0.0
    %258 = vmatpush1.msra.mxu0 0.0
    %259 = vmatprep.mubr.f32.mxu0 0.0
    %260 = vmatmul.mubr.f32.gmra.mrb[0].mxu0 %v180
    %v261 = vpop.f32.mrb[0].mxu0
    %v262 = vadd.f32 0.0, %v261
    %v263 = vpop.f32.mrb[0].mxu0
    %264 = vmatprep.mubr.f32.mxu0 0.0
    %265 = vmatmul.mubr.f32.gmra.mrb[0].mxu0 %v183
    %v266 = vpop.f32.mrb[0].mxu0
    %v267 = vadd.f32 0.0, %v266
    %v268 = vpop.f32.mrb[0].mxu0
    %269 = vmatprep.mubr.f32.mxu0 0.0
    %270 = vmatmul.mubr.f32.gmra.mrb[0].mxu0 %v186
    %v271 = vpop.f32.mrb[0].mxu0
    %v272 = vadd.f32 0.0, %v271
    %v273 = vpop.f32.mrb[0].mxu0
    %274 = vmatprep.mubr.f32.mxu0 0.0
    %275 = vmatmul.mubr.f32.gmra.mrb[0].mxu0 %v189
    %v276 = vpop.f32.mrb[0].mxu0
    %v277 = vadd.f32 0.0, %v276
    %v278 = vpop.f32.mrb[0].mxu0
    %279 = vdwg.mxu0
    %v281 = vsel %vm178, %v159, 0
    %v284 = vsel %vm178, %v160, 0
    %v287 = vsel %vm178, %v161, 0
    %v290 = vsel %vm178, %v162, 0
    %v293 = vsel %vm191, %v176, 0
    %295 = vmatprep.subr.mxu0 0.0
    %296 = vmatpush1.msra.mxu0 %v293
    %297 = vmatprep.subr.mxu0 0.0
    %298 = vmatpush1.msra.mxu0 0.0
    %299 = vmatprep.subr.mxu0 0.0
    %300 = vmatpush1.msra.mxu0 0.0
    %301 = vmatprep.subr.mxu0 0.0
    %302 = vmatpush1.msra.mxu0 0.0
    %303 = vmatprep.subr.mxu0 0.0
    %304 = vmatpush1.msra.mxu0 0.0
    %305 = vmatprep.subr.mxu0 0.0
    %306 = vmatpush1.msra.mxu0 0.0
    %307 = vmatprep.subr.mxu0 0.0
    %308 = vmatpush1.msra.mxu0 0.0
    %309 = vmatprep.subr.mxu0 0.0
    %310 = vmatpush1.msra.mxu0 0.0
    %311 = vmatprep.subr.mxu0 0.0
    %312 = vmatpush1.msra.mxu0 0.0
    %313 = vmatprep.subr.mxu0 0.0
    %314 = vmatpush1.msra.mxu0 0.0
    %315 = vmatprep.subr.mxu0 0.0
    %316 = vmatpush1.msra.mxu0 0.0
    %317 = vmatprep.subr.mxu0 0.0
    %318 = vmatpush1.msra.mxu0 0.0
    %319 = vmatprep.subr.mxu0 0.0
    %320 = vmatpush1.msra.mxu0 0.0
    %321 = vmatprep.subr.mxu0 0.0
    %322 = vmatpush1.msra.mxu0 0.0
    %323 = vmatprep.subr.mxu0 0.0
    %324 = vmatpush1.msra.mxu0 0.0
    %325 = vmatprep.subr.mxu0 0.0
    %326 = vmatpush1.msra.mxu0 0.0
    %327 = vmatprep.subr.mxu0 0.0
    %328 = vmatpush1.msra.mxu0 0.0
    %329 = vmatprep.subr.mxu0 0.0
    %330 = vmatpush1.msra.mxu0 0.0
    %331 = vmatprep.subr.mxu0 0.0
    %332 = vmatpush1.msra.mxu0 0.0
    %333 = vmatprep.subr.mxu0 0.0
    %334 = vmatpush1.msra.mxu0 0.0
    %335 = vmatprep.subr.mxu0 0.0
    %336 = vmatpush1.msra.mxu0 0.0
    %337 = vmatprep.subr.mxu0 0.0
    %338 = vmatpush1.msra.mxu0 0.0
    %339 = vmatprep.subr.mxu0 0.0
    %340 = vmatpush1.msra.mxu0 0.0
    %341 = vmatprep.subr.mxu0 0.0
    %342 = vmatpush1.msra.mxu0 0.0
    %343 = vmatprep.subr.mxu0 0.0
    %344 = vmatpush1.msra.mxu0 0.0
    %345 = vmatprep.subr.mxu0 0.0
    %346 = vmatpush1.msra.mxu0 0.0
    %347 = vmatprep.subr.mxu0 0.0
    %348 = vmatpush1.msra.mxu0 0.0
    %349 = vmatprep.subr.mxu0 0.0
    %350 = vmatpush1.msra.mxu0 0.0
    %351 = vmatprep.subr.mxu0 0.0
    %352 = vmatpush1.msra.mxu0 0.0
    %353 = vmatprep.subr.mxu0 0.0
    %354 = vmatpush1.msra.mxu0 0.0
    %355 = vmatprep.subr.mxu0 0.0
    %356 = vmatpush1.msra.mxu0 0.0
    %357 = vmatprep.subr.mxu0 0.0
    %358 = vmatpush1.msra.mxu0 0.0
    %359 = vmatprep.mubr.f32.mxu0 0.0
    %360 = vmatmul.mubr.f32.gmra.mrb[0].mxu0 %v281
    %v361 = vpop.f32.mrb[0].mxu0
    %v362 = vadd.f32 %v262, %v361
    %v363 = vpop.f32.mrb[0].mxu0
    %364 = vmatprep.mubr.f32.mxu0 0.0
    %365 = vmatmul.mubr.f32.gmra.mrb[0].mxu0 %v284
    %v366 = vpop.f32.mrb[0].mxu0
    %v367 = vadd.f32 %v267, %v366
    %v368 = vpop.f32.mrb[0].mxu0
    %369 = vmatprep.mubr.f32.mxu0 0.0
    %370 = vmatmul.mubr.f32.gmra.mrb[0].mxu0 %v287
    %v371 = vpop.f32.mrb[0].mxu0
    %v372 = vadd.f32 %v272, %v371
    %v373 = vpop.f32.mrb[0].mxu0
    %374 = vmatprep.mubr.f32.mxu0 0.0
    %375 = vmatmul.mubr.f32.gmra.mrb[0].mxu0 %v290
    %v376 = vpop.f32.mrb[0].mxu0
    %v377 = vadd.f32 %v277, %v376
    %v378 = vpop.f32.mrb[0].mxu0
    %379 = vdwg.mxu0
    %v380 = vld [vmem:[%s3] sm:$0x1]
    %v382 = vlaneseq
    %v383 = vshrl.u32 %v382, 7
    %v384 = vsub.s32 0, %v383
    %v385 = vrot.slane %v380, %v384
    %v387 = vadd.f32 %v362, %v385
    %v388 = vadd.f32 %v367, %v385
    %v389 = vadd.f32 %v372, %v385
    %v390 = vadd.f32 %v377, %v385
    %v391 = vmax.f32 %v387, 0.0
    %v392 = vmax.f32 %v388, 0.0
    %v393 = vmax.f32 %v389, 0.0
    %v394 = vmax.f32 %v390, 0.0
    %v395 = vrot.slane %v391, 7
    %v396 = vrot.slane %v392, 7
    %v397 = vrot.slane %v393, 7
    %v398 = vrot.slane %v394, 7
    %v399 = vsel %vm167, %v397, %v398
    %v400 = vsel %vm167, %v396, %v397
    %v401 = vsel %vm167, %v395, %v396
    %v402 = vsel %vm167, %v398, %v395
    %v403 = vmul.f32 %v402, %v143
    %v404 = vmul.f32 %v401, %v144
    %v405 = vmul.f32 %v400, %v145
    %v406 = vmul.f32 %v399, %v146
    %v407 = vld [vmem:[#allocation2] sm:$0xff]
    %v408 = vld [vmem:[#allocation2 + $0x8] sm:$0xff]
    %v409 = vld [vmem:[#allocation2 + $0x10] sm:$0xff]
    %v410 = vld [vmem:[#allocation2 + $0x18] sm:$0xff]
    %v411 = vld [vmem:[#allocation2 + $0x20] sm:$0xff]
    %v412 = vld [vmem:[#allocation2 + $0x28] sm:$0xff]
    %v413 = vld [vmem:[#allocation2 + $0x30] sm:$0xff]
    %v414 = vld [vmem:[#allocation2 + $0x38] sm:$0xff]
    %v415 = vld [vmem:[#allocation2 + $0x40] sm:$0xff]
    %v416 = vld [vmem:[#allocation2 + $0x48] sm:$0xff]
    %v417 = vld [vmem:[#allocation2 + $0x50] sm:$0xff]
    %v418 = vld [vmem:[#allocation2 + $0x58] sm:$0xff]
    %v419 = vld [vmem:[#allocation2 + $0x60] sm:$0xff]
    %v420 = vld [vmem:[#allocation2 + $0x68] sm:$0xff]
    %v421 = vld [vmem:[#allocation2 + $0x70] sm:$0xff]
    %v422 = vld [vmem:[#allocation2 + $0x78] sm:$0xff]
    %v423 = vld [vmem:[#allocation2 + $0x80] sm:$0xff]
    %v424 = vld [vmem:[#allocation2 + $0x88] sm:$0xff]
    %v425 = vld [vmem:[#allocation2 + $0x90] sm:$0xff]
    %v426 = vld [vmem:[#allocation2 + $0x98] sm:$0xff]
    %v427 = vld [vmem:[#allocation2 + $0xa0] sm:$0xff]
    %v428 = vld [vmem:[#allocation2 + $0xa8] sm:$0xff]
    %v429 = vld [vmem:[#allocation2 + $0xb0] sm:$0xff]
    %v430 = vld [vmem:[#allocation2 + $0xb8] sm:$0xff]
    %v431 = vld [vmem:[#allocation2 + $0xc0] sm:$0xff]
    %v432 = vld [vmem:[#allocation2 + $0xc8] sm:$0xff]
    %v433 = vld [vmem:[#allocation2 + $0xd0] sm:$0xff]
    %v434 = vld [vmem:[#allocation2 + $0xd8] sm:$0xff]
    %v435 = vld [vmem:[#allocation2 + $0xe0] sm:$0xff]
    %v436 = vld [vmem:[#allocation2 + $0xe8] sm:$0xff]
    %v437 = vld [vmem:[#allocation2 + $0xf0] sm:$0xff]
    %v438 = vld [vmem:[#allocation2 + $0xf8] sm:$0xff]
    %v439 = vld [vmem:[%s5] sm:$0x1]
    %v441 = vlaneseq
    %v442 = vshrl.u32 %v441, 7
    %v443 = vsub.s32 0, %v442
    %v444 = vrot.slane %v439, %v443
    %446 = vmatprep.subr.mxu0 0.0
    %447 = vmatpush1.msra.mxu0 %v407
    %448 = vmatprep.subr.mxu0 0.0
    %449 = vmatpush1.msra.mxu0 %v408
    %450 = vmatprep.subr.mxu0 0.0
    %451 = vmatpush1.msra.mxu0 %v409
    %452 = vmatprep.subr.mxu0 0.0
    %453 = vmatpush1.msra.mxu0 %v410
    %454 = vmatprep.subr.mxu0 0.0
    %455 = vmatpush1.msra.mxu0 %v411
    %456 = vmatprep.subr.mxu0 0.0
    %457 = vmatpush1.msra.mxu0 %v412
    %458 = vmatprep.subr.mxu0 0.0
    %459 = vmatpush1.msra.mxu0 %v413
    %460 = vmatprep.subr.mxu0 0.0
    %461 = vmatpush1.msra.mxu0 %v414
    %462 = vmatprep.subr.mxu0 0.0
    %463 = vmatpush1.msra.mxu0 %v415
    %464 = vmatprep.subr.mxu0 0.0
    %465 = vmatpush1.msra.mxu0 %v416
    %466 = vmatprep.subr.mxu0 0.0
    %467 = vmatpush1.msra.mxu0 %v417
    %468 = vmatprep.subr.mxu0 0.0
    %469 = vmatpush1.msra.mxu0 %v418
    %470 = vmatprep.subr.mxu0 0.0
    %471 = vmatpush1.msra.mxu0 %v419
    %472 = vmatprep.subr.mxu0 0.0
    %473 = vmatpush1.msra.mxu0 %v420
    %474 = vmatprep.subr.mxu0 0.0
    %475 = vmatpush1.msra.mxu0 %v421
    %476 = vmatprep.subr.mxu0 0.0
    %477 = vmatpush1.msra.mxu0 %v422
    %478 = vmatprep.subr.mxu0 0.0
    %479 = vmatpush1.msra.mxu0 %v423
    %480 = vmatprep.subr.mxu0 0.0
    %481 = vmatpush1.msra.mxu0 %v424
    %482 = vmatprep.subr.mxu0 0.0
    %483 = vmatpush1.msra.mxu0 %v425
    %484 = vmatprep.subr.mxu0 0.0
    %485 = vmatpush1.msra.mxu0 %v426
    %486 = vmatprep.subr.mxu0 0.0
    %487 = vmatpush1.msra.mxu0 %v427
    %488 = vmatprep.subr.mxu0 0.0
    %489 = vmatpush1.msra.mxu0 %v428
    %490 = vmatprep.subr.mxu0 0.0
    %491 = vmatpush1.msra.mxu0 %v429
    %492 = vmatprep.subr.mxu0 0.0
    %493 = vmatpush1.msra.mxu0 %v430
    %494 = vmatprep.subr.mxu0 0.0
    %495 = vmatpush1.msra.mxu0 %v431
    %496 = vmatprep.subr.mxu0 0.0
    %497 = vmatpush1.msra.mxu0 %v432
    %498 = vmatprep.subr.mxu0 0.0
    %499 = vmatpush1.msra.mxu0 %v433
    %500 = vmatprep.subr.mxu0 0.0
    %501 = vmatpush1.msra.mxu0 %v434
    %502 = vmatprep.subr.mxu0 0.0
    %503 = vmatpush1.msra.mxu0 %v435
    %504 = vmatprep.subr.mxu0 0.0
    %505 = vmatpush1.msra.mxu0 %v436
    %506 = vmatprep.subr.mxu0 0.0
    %507 = vmatpush1.msra.mxu0 %v437
    %508 = vmatprep.subr.mxu0 0.0
    %509 = vmatpush1.msra.mxu0 %v438
    %510 = vmatprep.mubr.f32.mxu0 %v403
    %511 = vmatmul.mubr.f32.gmra.mrb[0].mxu0 %v391
    %v512 = vpop.f32.mrb[0].mxu0
    %v513 = vadd.f32 %v444, %v512
    %v514 = vpop.f32.mrb[0].mxu0
    %515 = vmatprep.mubr.f32.mxu0 %v404
    %516 = vmatmul.mubr.f32.gmra.mrb[0].mxu0 %v392
    %v517 = vpop.f32.mrb[0].mxu0
    %v518 = vadd.f32 %v444, %v517
    %v519 = vpop.f32.mrb[0].mxu0
    %520 = vmatprep.mubr.f32.mxu0 %v405
    %521 = vmatmul.mubr.f32.gmra.mrb[0].mxu0 %v393
    %v522 = vpop.f32.mrb[0].mxu0
    %v523 = vadd.f32 %v444, %v522
    %v524 = vpop.f32.mrb[0].mxu0
    %525 = vmatprep.mubr.f32.mxu0 %v406
    %526 = vmatmul.mubr.f32.gmra.mrb[0].mxu0 %v394
    %v527 = vpop.f32.mrb[0].mxu0
    %v528 = vadd.f32 %v444, %v527
    %v529 = vpop.f32.mrb[0].mxu0
    %530 = vdwg.mxu0
    %v531 = vmax.f32 %v513, 0.0
    %v532 = vmax.f32 %v518, 0.0
    %v533 = vmax.f32 %v523, 0.0
    %v534 = vmax.f32 %v528, 0.0
    %v535 = vld [vmem:[%s6] sm:$0xf]
    %v536 = vld [vmem:[%s7] sm:$0x1]
    %v538 = vlaneseq
    %v539 = vshrl.u32 %v538, 7
    %v540 = vsub.s32 0, %v539
    %v541 = vrot.slane %v536, %v540
    %v544 = vsel %vm191, %v535, 0
    %546 = vmatprep.subr.mxu0 0.0
    %547 = vmatpush1.msra.mxu0 %v544
    %548 = vmatprep.subr.mxu0 0.0
    %549 = vmatpush1.msra.mxu0 0.0
    %550 = vmatprep.subr.mxu0 0.0
    %551 = vmatpush1.msra.mxu0 0.0
    %552 = vmatprep.subr.mxu0 0.0
    %553 = vmatpush1.msra.mxu0 0.0
    %554 = vmatprep.subr.mxu0 0.0
    %555 = vmatpush1.msra.mxu0 0.0
    %556 = vmatprep.subr.mxu0 0.0
    %557 = vmatpush1.msra.mxu0 0.0
    %558 = vmatprep.subr.mxu0 0.0
    %559 = vmatpush1.msra.mxu0 0.0
    %560 = vmatprep.subr.mxu0 0.0
    %561 = vmatpush1.msra.mxu0 0.0
    %562 = vmatprep.subr.mxu0 0.0
    %563 = vmatpush1.msra.mxu0 0.0
    %564 = vmatprep.subr.mxu0 0.0
    %565 = vmatpush1.msra.mxu0 0.0
    %566 = vmatprep.subr.mxu0 0.0
    %567 = vmatpush1.msra.mxu0 0.0
    %568 = vmatprep.subr.mxu0 0.0
    %569 = vmatpush1.msra.mxu0 0.0
    %570 = vmatprep.subr.mxu0 0.0
    %571 = vmatpush1.msra.mxu0 0.0
    %572 = vmatprep.subr.mxu0 0.0
    %573 = vmatpush1.msra.mxu0 0.0
    %574 = vmatprep.subr.mxu0 0.0
    %575 = vmatpush1.msra.mxu0 0.0
    %576 = vmatprep.subr.mxu0 0.0
    %577 = vmatpush1.msra.mxu0 0.0
    %578 = vmatprep.subr.mxu0 0.0
    %579 = vmatpush1.msra.mxu0 0.0
    %580 = vmatprep.subr.mxu0 0.0
    %581 = vmatpush1.msra.mxu0 0.0
    %582 = vmatprep.subr.mxu0 0.0
    %583 = vmatpush1.msra.mxu0 0.0
    %584 = vmatprep.subr.mxu0 0.0
    %585 = vmatpush1.msra.mxu0 0.0
    %586 = vmatprep.subr.mxu0 0.0
    %587 = vmatpush1.msra.mxu0 0.0
    %588 = vmatprep.subr.mxu0 0.0
    %589 = vmatpush1.msra.mxu0 0.0
    %590 = vmatprep.subr.mxu0 0.0
    %591 = vmatpush1.msra.mxu0 0.0
    %592 = vmatprep.subr.mxu0 0.0
    %593 = vmatpush1.msra.mxu0 0.0
    %594 = vmatprep.subr.mxu0 0.0
    %595 = vmatpush1.msra.mxu0 0.0
    %596 = vmatprep.subr.mxu0 0.0
    %597 = vmatpush1.msra.mxu0 0.0
    %598 = vmatprep.subr.mxu0 0.0
    %599 = vmatpush1.msra.mxu0 0.0
    %600 = vmatprep.subr.mxu0 0.0
    %601 = vmatpush1.msra.mxu0 0.0
    %602 = vmatprep.subr.mxu0 0.0
    %603 = vmatpush1.msra.mxu0 0.0
    %604 = vmatprep.subr.mxu0 0.0
    %605 = vmatpush1.msra.mxu0 0.0
    %606 = vmatprep.subr.mxu0 0.0
    %607 = vmatpush1.msra.mxu0 0.0
    %608 = vmatprep.subr.mxu0 0.0
    %609 = vmatpush1.msra.mxu0 0.0
    %610 = vmatprep.mubr.f32.mxu0 0.0
    %611 = vmatmul.mubr.f32.gmra.mrb[0].mxu0 %v281
    %v612 = vpop.f32.mrb[0].mxu0
    %v613 = vadd.f32 %v541, %v612
    %v614 = vpop.f32.mrb[0].mxu0
    %615 = vmatprep.mubr.f32.mxu0 0.0
    %616 = vmatmul.mubr.f32.gmra.mrb[0].mxu0 %v284
    %v617 = vpop.f32.mrb[0].mxu0
    %v618 = vadd.f32 %v541, %v617
    %v619 = vpop.f32.mrb[0].mxu0
    %620 = vmatprep.mubr.f32.mxu0 0.0
    %621 = vmatmul.mubr.f32.gmra.mrb[0].mxu0 %v287
    %v622 = vpop.f32.mrb[0].mxu0
    %v623 = vadd.f32 %v541, %v622
    %v624 = vpop.f32.mrb[0].mxu0
    %625 = vmatprep.mubr.f32.mxu0 0.0
    %626 = vmatmul.mubr.f32.gmra.mrb[0].mxu0 %v290
    %v627 = vpop.f32.mrb[0].mxu0
    %v628 = vadd.f32 %v541, %v627
    %v629 = vpop.f32.mrb[0].mxu0
    %630 = vdwg.mxu0
    %v631 = vadd.f32 %v531, %v613
    %v632 = vadd.f32 %v532, %v618
    %v633 = vadd.f32 %v533, %v623
    %v634 = vadd.f32 %v534, %v628
    %v635 = vmax.f32 %v631, 0.0
    %v636 = vmax.f32 %v632, 0.0
    %v637 = vmax.f32 %v633, 0.0
    %v638 = vmax.f32 %v634, 0.0
    %v639 = vrot.slane %v635, 6
    %v640 = vrot.slane %v636, 6
    %v641 = vrot.slane %v637, 6
    %v642 = vrot.slane %v638, 6
    %vm643 = vcmp.lt.s32.totalorder %v83, 2
    %v644 = vsel %vm643, %v641, %v642
    %v645 = vsel %vm643, %v640, %v641
    %v646 = vsel %vm643, %v639, %v640
    %v647 = vsel %vm643, %v642, %v639
    %v648 = vmul.f32 %v647, %v155
    %v649 = vmul.f32 %v646, %v156
    %v650 = vmul.f32 %v645, %v157
    %v651 = vmul.f32 %v644, %v158
    %v652 = vld [vmem:[#allocation4] sm:$0xff]
    %v653 = vld [vmem:[#allocation4 + $0x8] sm:$0xff]
    %v654 = vld [vmem:[#allocation4 + $0x10] sm:$0xff]
    %v655 = vld [vmem:[#allocation4 + $0x18] sm:$0xff]
    %v656 = vld [vmem:[#allocation4 + $0x20] sm:$0xff]
    %v657 = vld [vmem:[#allocation4 + $0x28] sm:$0xff]
    %v658 = vld [vmem:[#allocation4 + $0x30] sm:$0xff]
    %v659 = vld [vmem:[#allocation4 + $0x38] sm:$0xff]
    %v660 = vld [vmem:[#allocation4 + $0x40] sm:$0xff]
    %v661 = vld [vmem:[#allocation4 + $0x48] sm:$0xff]
    %v662 = vld [vmem:[#allocation4 + $0x50] sm:$0xff]
    %v663 = vld [vmem:[#allocation4 + $0x58] sm:$0xff]
    %v664 = vld [vmem:[#allocation4 + $0x60] sm:$0xff]
    %v665 = vld [vmem:[#allocation4 + $0x68] sm:$0xff]
    %v666 = vld [vmem:[#allocation4 + $0x70] sm:$0xff]
    %v667 = vld [vmem:[#allocation4 + $0x78] sm:$0xff]
    %v668 = vld [vmem:[#allocation4 + $0x80] sm:$0xff]
    %v669 = vld [vmem:[#allocation4 + $0x88] sm:$0xff]
    %v670 = vld [vmem:[#allocation4 + $0x90] sm:$0xff]
    %v671 = vld [vmem:[#allocation4 + $0x98] sm:$0xff]
    %v672 = vld [vmem:[#allocation4 + $0xa0] sm:$0xff]
    %v673 = vld [vmem:[#allocation4 + $0xa8] sm:$0xff]
    %v674 = vld [vmem:[#allocation4 + $0xb0] sm:$0xff]
    %v675 = vld [vmem:[#allocation4 + $0xb8] sm:$0xff]
    %v676 = vld [vmem:[#allocation4 + $0xc0] sm:$0xff]
    %v677 = vld [vmem:[#allocation4 + $0xc8] sm:$0xff]
    %v678 = vld [vmem:[#allocation4 + $0xd0] sm:$0xff]
    %v679 = vld [vmem:[#allocation4 + $0xd8] sm:$0xff]
    %v680 = vld [vmem:[#allocation4 + $0xe0] sm:$0xff]
    %v681 = vld [vmem:[#allocation4 + $0xe8] sm:$0xff]
    %v682 = vld [vmem:[#allocation4 + $0xf0] sm:$0xff]
    %v683 = vld [vmem:[#allocation4 + $0xf8] sm:$0xff]
    %v684 = vld [vmem:[%s9] sm:$0x1]
    %v686 = vlaneseq
    %v687 = vshrl.u32 %v686, 7
    %v688 = vsub.s32 0, %v687
    %v689 = vrot.slane %v684, %v688
    %691 = vmatprep.subr.mxu0 0.0
    %692 = vmatpush1.msra.mxu0 %v652
    %693 = vmatprep.subr.mxu0 0.0
    %694 = vmatpush1.msra.mxu0 %v653
    %695 = vmatprep.subr.mxu0 0.0
    %696 = vmatpush1.msra.mxu0 %v654
    %697 = vmatprep.subr.mxu0 0.0
    %698 = vmatpush1.msra.mxu0 %v655
    %699 = vmatprep.subr.mxu0 0.0
    %700 = vmatpush1.msra.mxu0 %v656
    %701 = vmatprep.subr.mxu0 0.0
    %702 = vmatpush1.msra.mxu0 %v657
    %703 = vmatprep.subr.mxu0 0.0
    %704 = vmatpush1.msra.mxu0 %v658
    %705 = vmatprep.subr.mxu0 0.0
    %706 = vmatpush1.msra.mxu0 %v659
    %707 = vmatprep.subr.mxu0 0.0
    %708 = vmatpush1.msra.mxu0 %v660
    %709 = vmatprep.subr.mxu0 0.0
    %710 = vmatpush1.msra.mxu0 %v661
    %711 = vmatprep.subr.mxu0 0.0
    %712 = vmatpush1.msra.mxu0 %v662
    %713 = vmatprep.subr.mxu0 0.0
    %714 = vmatpush1.msra.mxu0 %v663
    %715 = vmatprep.subr.mxu0 0.0
    %716 = vmatpush1.msra.mxu0 %v664
    %717 = vmatprep.subr.mxu0 0.0
    %718 = vmatpush1.msra.mxu0 %v665
    %719 = vmatprep.subr.mxu0 0.0
    %720 = vmatpush1.msra.mxu0 %v666
    %721 = vmatprep.subr.mxu0 0.0
    %722 = vmatpush1.msra.mxu0 %v667
    %723 = vmatprep.subr.mxu0 0.0
    %724 = vmatpush1.msra.mxu0 %v668
    %725 = vmatprep.subr.mxu0 0.0
    %726 = vmatpush1.msra.mxu0 %v669
    %727 = vmatprep.subr.mxu0 0.0
    %728 = vmatpush1.msra.mxu0 %v670
    %729 = vmatprep.subr.mxu0 0.0
    %730 = vmatpush1.msra.mxu0 %v671
    %731 = vmatprep.subr.mxu0 0.0
    %732 = vmatpush1.msra.mxu0 %v672
    %733 = vmatprep.subr.mxu0 0.0
    %734 = vmatpush1.msra.mxu0 %v673
    %735 = vmatprep.subr.mxu0 0.0
    %736 = vmatpush1.msra.mxu0 %v674
    %737 = vmatprep.subr.mxu0 0.0
    %738 = vmatpush1.msra.mxu0 %v675
    %739 = vmatprep.subr.mxu0 0.0
    %740 = vmatpush1.msra.mxu0 %v676
    %741 = vmatprep.subr.mxu0 0.0
    %742 = vmatpush1.msra.mxu0 %v677
    %743 = vmatprep.subr.mxu0 0.0
    %744 = vmatpush1.msra.mxu0 %v678
    %745 = vmatprep.subr.mxu0 0.0
    %746 = vmatpush1.msra.mxu0 %v679
    %747 = vmatprep.subr.mxu0 0.0
    %748 = vmatpush1.msra.mxu0 %v680
    %749 = vmatprep.subr.mxu0 0.0
    %750 = vmatpush1.msra.mxu0 %v681
    %751 = vmatprep.subr.mxu0 0.0
    %752 = vmatpush1.msra.mxu0 %v682
    %753 = vmatprep.subr.mxu0 0.0
    %754 = vmatpush1.msra.mxu0 %v683
    %755 = vmatprep.mubr.f32.mxu0 %v648
    %756 = vmatmul.mubr.f32.gmra.mrb[0].mxu0 %v635
    %v757 = vpop.f32.mrb[0].mxu0
    %v758 = vadd.f32 %v689, %v757
    %v759 = vpop.f32.mrb[0].mxu0
    %760 = vmatprep.mubr.f32.mxu0 %v649
    %761 = vmatmul.mubr.f32.gmra.mrb[0].mxu0 %v636
    %v762 = vpop.f32.mrb[0].mxu0
    %v763 = vadd.f32 %v689, %v762
    %v764 = vpop.f32.mrb[0].mxu0
    %765 = vmatprep.mubr.f32.mxu0 %v650
    %766 = vmatmul.mubr.f32.gmra.mrb[0].mxu0 %v637
    %v767 = vpop.f32.mrb[0].mxu0
    %v768 = vadd.f32 %v689, %v767
    %v769 = vpop.f32.mrb[0].mxu0
    %770 = vmatprep.mubr.f32.mxu0 %v651
    %771 = vmatmul.mubr.f32.gmra.mrb[0].mxu0 %v638
    %v772 = vpop.f32.mrb[0].mxu0
    %v773 = vadd.f32 %v689, %v772
    %v774 = vpop.f32.mrb[0].mxu0
    %775 = vdwg.mxu0
    %v776 = vmax.f32 %v758, 0.0
    %v777 = vmax.f32 %v763, 0.0
    %v778 = vmax.f32 %v768, 0.0
    %v779 = vmax.f32 %v773, 0.0
    %v780 = vrot.slane %v776, 6
    %v781 = vrot.slane %v777, 6
    %v782 = vrot.slane %v778, 6
    %v783 = vrot.slane %v779, 6
    %v784 = vsel %vm643, %v782, %v783
    %v785 = vsel %vm643, %v781, %v782
    %v786 = vsel %vm643, %v780, %v781
    %v787 = vsel %vm643, %v783, %v780
    %v788 = vmul.f32 %v787, %v155
    %v789 = vmul.f32 %v786, %v156
    %v790 = vmul.f32 %v785, %v157
    %v791 = vmul.f32 %v784, %v158
    %v792 = vld [vmem:[#allocation6] sm:$0xff]
    %v793 = vld [vmem:[#allocation6 + $0x8] sm:$0xff]
    %v794 = vld [vmem:[#allocation6 + $0x10] sm:$0xff]
    %v795 = vld [vmem:[#allocation6 + $0x18] sm:$0xff]
    %v796 = vld [vmem:[#allocation6 + $0x20] sm:$0xff]
    %v797 = vld [vmem:[#allocation6 + $0x28] sm:$0xff]
    %v798 = vld [vmem:[#allocation6 + $0x30] sm:$0xff]
    %v799 = vld [vmem:[#allocation6 + $0x38] sm:$0xff]
    %v800 = vld [vmem:[#allocation6 + $0x40] sm:$0xff]
    %v801 = vld [vmem:[#allocation6 + $0x48] sm:$0xff]
    %v802 = vld [vmem:[#allocation6 + $0x50] sm:$0xff]
    %v803 = vld [vmem:[#allocation6 + $0x58] sm:$0xff]
    %v804 = vld [vmem:[#allocation6 + $0x60] sm:$0xff]
    %v805 = vld [vmem:[#allocation6 + $0x68] sm:$0xff]
    %v806 = vld [vmem:[#allocation6 + $0x70] sm:$0xff]
    %v807 = vld [vmem:[#allocation6 + $0x78] sm:$0xff]
    %v808 = vld [vmem:[#allocation6 + $0x80] sm:$0xff]
    %v809 = vld [vmem:[#allocation6 + $0x88] sm:$0xff]
    %v810 = vld [vmem:[#allocation6 + $0x90] sm:$0xff]
    %v811 = vld [vmem:[#allocation6 + $0x98] sm:$0xff]
    %v812 = vld [vmem:[#allocation6 + $0xa0] sm:$0xff]
    %v813 = vld [vmem:[#allocation6 + $0xa8] sm:$0xff]
    %v814 = vld [vmem:[#allocation6 + $0xb0] sm:$0xff]
    %v815 = vld [vmem:[#allocation6 + $0xb8] sm:$0xff]
    %v816 = vld [vmem:[#allocation6 + $0xc0] sm:$0xff]
    %v817 = vld [vmem:[#allocation6 + $0xc8] sm:$0xff]
    %v818 = vld [vmem:[#allocation6 + $0xd0] sm:$0xff]
    %v819 = vld [vmem:[#allocation6 + $0xd8] sm:$0xff]
    %v820 = vld [vmem:[#allocation6 + $0xe0] sm:$0xff]
    %v821 = vld [vmem:[#allocation6 + $0xe8] sm:$0xff]
    %v822 = vld [vmem:[#allocation6 + $0xf0] sm:$0xff]
    %v823 = vld [vmem:[#allocation6 + $0xf8] sm:$0xff]
    %v824 = vld [vmem:[%s11] sm:$0x1]
    %v826 = vlaneseq
    %v827 = vshrl.u32 %v826, 7
    %v828 = vsub.s32 0, %v827
    %v829 = vrot.slane %v824, %v828
    %831 = vmatprep.subr.mxu0 0.0
    %832 = vmatpush1.msra.mxu0 %v792
    %833 = vmatprep.subr.mxu0 0.0
    %834 = vmatpush1.msra.mxu0 %v793
    %835 = vmatprep.subr.mxu0 0.0
    %836 = vmatpush1.msra.mxu0 %v794
    %837 = vmatprep.subr.mxu0 0.0
    %838 = vmatpush1.msra.mxu0 %v795
    %839 = vmatprep.subr.mxu0 0.0
    %840 = vmatpush1.msra.mxu0 %v796
    %841 = vmatprep.subr.mxu0 0.0
    %842 = vmatpush1.msra.mxu0 %v797
    %843 = vmatprep.subr.mxu0 0.0
    %844 = vmatpush1.msra.mxu0 %v798
    %845 = vmatprep.subr.mxu0 0.0
    %846 = vmatpush1.msra.mxu0 %v799
    %847 = vmatprep.subr.mxu0 0.0
    %848 = vmatpush1.msra.mxu0 %v800
    %849 = vmatprep.subr.mxu0 0.0
    %850 = vmatpush1.msra.mxu0 %v801
    %851 = vmatprep.subr.mxu0 0.0
    %852 = vmatpush1.msra.mxu0 %v802
    %853 = vmatprep.subr.mxu0 0.0
    %854 = vmatpush1.msra.mxu0 %v803
    %855 = vmatprep.subr.mxu0 0.0
    %856 = vmatpush1.msra.mxu0 %v804
    %857 = vmatprep.subr.mxu0 0.0
    %858 = vmatpush1.msra.mxu0 %v805
    %859 = vmatprep.subr.mxu0 0.0
    %860 = vmatpush1.msra.mxu0 %v806
    %861 = vmatprep.subr.mxu0 0.0
    %862 = vmatpush1.msra.mxu0 %v807
    %863 = vmatprep.subr.mxu0 0.0
    %864 = vmatpush1.msra.mxu0 %v808
    %865 = vmatprep.subr.mxu0 0.0
    %866 = vmatpush1.msra.mxu0 %v809
    %867 = vmatprep.subr.mxu0 0.0
    %868 = vmatpush1.msra.mxu0 %v810
    %869 = vmatprep.subr.mxu0 0.0
    %870 = vmatpush1.msra.mxu0 %v811
    %871 = vmatprep.subr.mxu0 0.0
    %872 = vmatpush1.msra.mxu0 %v812
    %873 = vmatprep.subr.mxu0 0.0
    %874 = vmatpush1.msra.mxu0 %v813
    %875 = vmatprep.subr.mxu0 0.0
    %876 = vmatpush1.msra.mxu0 %v814
    %877 = vmatprep.subr.mxu0 0.0
    %878 = vmatpush1.msra.mxu0 %v815
    %879 = vmatprep.subr.mxu0 0.0
    %880 = vmatpush1.msra.mxu0 %v816
    %881 = vmatprep.subr.mxu0 0.0
    %882 = vmatpush1.msra.mxu0 %v817
    %883 = vmatprep.subr.mxu0 0.0
    %884 = vmatpush1.msra.mxu0 %v818
    %885 = vmatprep.subr.mxu0 0.0
    %886 = vmatpush1.msra.mxu0 %v819
    %887 = vmatprep.subr.mxu0 0.0
    %888 = vmatpush1.msra.mxu0 %v820
    %889 = vmatprep.subr.mxu0 0.0
    %890 = vmatpush1.msra.mxu0 %v821
    %891 = vmatprep.subr.mxu0 0.0
    %892 = vmatpush1.msra.mxu0 %v822
    %893 = vmatprep.subr.mxu0 0.0
    %894 = vmatpush1.msra.mxu0 %v823
    %895 = vmatprep.mubr.f32.mxu0 %v788
    %896 = vmatmul.mubr.f32.gmra.mrb[0].mxu0 %v776
    %v897 = vpop.f32.mrb[0].mxu0
    %v898 = vadd.f32 %v829, %v897
    %v899 = vpop.f32.mrb[0].mxu0
    %900 = vmatprep.mubr.f32.mxu0 %v789
    %901 = vmatmul.mubr.f32.gmra.mrb[0].mxu0 %v777
    %v902 = vpop.f32.mrb[0].mxu0
    %v903 = vadd.f32 %v829, %v902
    %v904 = vpop.f32.mrb[0].mxu0
    %905 = vmatprep.mubr.f32.mxu0 %v790
    %906 = vmatmul.mubr.f32.gmra.mrb[0].mxu0 %v778
    %v907 = vpop.f32.mrb[0].mxu0
    %v908 = vadd.f32 %v829, %v907
    %v909 = vpop.f32.mrb[0].mxu0
    %910 = vmatprep.mubr.f32.mxu0 %v791
    %911 = vmatmul.mubr.f32.gmra.mrb[0].mxu0 %v779
    %v912 = vpop.f32.mrb[0].mxu0
    %v913 = vadd.f32 %v829, %v912
    %v914 = vpop.f32.mrb[0].mxu0
    %915 = vdwg.mxu0
    %v916 = vmax.f32 %v898, 0.0
    %v917 = vmax.f32 %v903, 0.0
    %v918 = vmax.f32 %v908, 0.0
    %v919 = vmax.f32 %v913, 0.0
    %v920 = vadd.f32 %v916, %v635
    %v921 = vadd.f32 %v917, %v636
    %v922 = vadd.f32 %v918, %v637
    %v923 = vadd.f32 %v919, %v638
    %v924 = vmax.f32 %v920, 0.0
    %v925 = vmax.f32 %v921, 0.0
    %v926 = vmax.f32 %v922, 0.0
    %v927 = vmax.f32 %v923, 0.0
    %vm928 = vcmask 64512
    %929 = vst.msk [vmem:[%s12] sm:$0xff] %vm928, %v924
    %930 = vst.msk [vmem:[%s12 + $0x8] sm:$0xff] %vm928, %v925
    %931 = vst.msk [vmem:[%s12 + $0x10] sm:$0xff] %vm928, %v926
    %932 = vst.msk [vmem:[%s12 + $0x18] sm:$0xff] %vm928, %v927
    // Predicated region
    $region62: #{tpu_custom_call.1} parent=1 // pred_check
      _
    $region63: #{tpu_custom_call.1} parent=1 // pred_check_branch
      %934 = sbr.rel (0) target = $region65
    $region64: #{tpu_custom_call.1} parent=1 // pred_region
      _
    $region65: #{tpu_custom_call.1} parent=1 // pred_fallthru
      _
    // Predicated region
    $region66: #{tpu_custom_call.1} parent=1 // pred_check
      _
    $region67: #{tpu_custom_call.1} parent=1 // pred_check_branch
      %936 = sbr.rel (0) target = $region69
    $region68: #{tpu_custom_call.1} parent=1 // pred_region
      _
    $region69: #{tpu_custom_call.1} parent=1 // pred_fallthru
      _
    %937 = vsyncpa [#allocation3], 1
    %938 = vsyncpa [#allocation5], 1

// kernel: tpu_custom_call.1
$region0: #{tpu_custom_call.1}
  #allocation0 [shape = 'u32[]', space=smem, size = 0x4, offset = 0x4, fixed_abs, tag = 'smem constant byte address 0x4 - core index']
  #allocation1 [shape = 'u32[144,128]{1,0:T(1,128)}', space=vmem, size = 0x12000, scoped, tag = 'internal scratch']
  %s0 = inlined_call_operand.vmem [shape: f32[32,4], index: 0, kind: input, shape index: {}]
  %s1 = inlined_call_operand.vmem [shape: f32[4,128], index: 1, kind: input, shape index: {}]
  %s2 = inlined_call_operand.vmem [shape: f32[4,128], index: 2, kind: input, shape index: {}]
  %s3 = inlined_call_operand.vmem [shape: f32[1,128], index: 3, kind: input, shape index: {}]
  %s4 = inlined_call_operand.hbm [shape: f32[256,128], index: 4, kind: input, shape index: {}]
  %s5 = inlined_call_operand.vmem [shape: f32[1,128], index: 5, kind: input, shape index: {}]
  %s6 = inlined_call_operand.vmem [shape: f32[4,128], index: 6, kind: input, shape index: {}]
  %s7 = inlined_call_operand.vmem [shape: f32[1,128], index: 7, kind: input, shape index: {}]
  %s8 = inlined_call_operand.hbm [shape: f32[256,128], index: 8, kind: input, shape index: {}]
  %s9 = inlined_call_operand.vmem [shape: f32[1,128], index: 9, kind: input, shape index: {}]
  %s10 = inlined_call_operand.hbm [shape: f32[256,128], index: 10, kind: input, shape index: {}]
  %s11 = inlined_call_operand.vmem [shape: f32[1,128], index: 11, kind: input, shape index: {}]
  %s12 = inlined_call_operand.vmem [shape: f32[32,8], index: 12, kind: output, shape index: {}]
  %s13 = sld [smem:[#allocation0]]
  $region70: #{tpu_custom_call.1} parent=0
    _
  %s15 = ssub.s32 1, %s13
  %s16 = scalar_select 0, %s15, %s13
  $region1: #{tpu_custom_call.1} parent=0
    #allocation2 [shape = 'u8[131072]{0}', space=vmem, size = 0x20000, scoped, tag = 'input window, operand 4, single buffered']
    #allocation3 [shape = 's32[1]{0}', space=sflag, size = 0x4, scoped, tag = 'scoped memory for tpu_custom_call.1']
    #allocation4 [shape = 'u8[131072]{0}', space=vmem, size = 0x20000, scoped, tag = 'input window, operand 8, single buffered']
    #allocation5 [shape = 's32[1]{0}', space=sflag, size = 0x4, scoped, tag = 'scoped memory for tpu_custom_call.1']
    #allocation6 [shape = 'u8[131072]{0}', space=vmem, size = 0x20000, scoped, tag = 'input window, operand 10, single buffered']
    %17 = vsyncpa [#allocation3], 0
    %18 = vsyncpa [#allocation5], 0
    // Predicated region
    $region2: #{tpu_custom_call.1} parent=1 // pred_check
      _
    $region3: #{tpu_custom_call.1} parent=1 // pred_check_branch
      %20 = sbr.rel (0) target = $region5
    $region4: #{tpu_custom_call.1} parent=1 // pred_region
      _
    $region5: #{tpu_custom_call.1} parent=1 // pred_fallthru
      _
    // Predicated region
    $region6: #{tpu_custom_call.1} parent=1 // pred_check
      _
    $region7: #{tpu_custom_call.1} parent=1 // pred_check_branch
      %22 = sbr.rel (0) target = $region9
    $region8: #{tpu_custom_call.1} parent=1 // pred_region
      _
    $region9: #{tpu_custom_call.1} parent=1 // pred_fallthru
      _
    // Predicated region
    $region10: #{tpu_custom_call.1} parent=1 // pred_check
      _
    $region11: #{tpu_custom_call.1} parent=1 // pred_check_branch
      %24 = sbr.rel (0) target = $region13
    $region12: #{tpu_custom_call.1} parent=1 // pred_region
      _
    $region13: #{tpu_custom_call.1} parent=1 // pred_fallthru
      _
    // Predicated region
    $region14: #{tpu_custom_call.1} parent=1 // pred_check
      _
    $region15: #{tpu_custom_call.1} parent=1 // pred_check_branch
      %26 = sbr.rel (0) target = $region17
    $region16: #{tpu_custom_call.1} parent=1 // pred_region
      _
    $region17: #{tpu_custom_call.1} parent=1 // pred_fallthru
      _
    // Predicated region
    $region18: #{tpu_custom_call.1} parent=1 // pred_check
      _
    $region19: #{tpu_custom_call.1} parent=1 // pred_check_branch
      %28 = sbr.rel (0) target = $region21
    $region20: #{tpu_custom_call.1} parent=1 // pred_region
      %s30 = ssub.s32 4096, 4096
      %31 = vsyncadd [#allocation3], %s30
      %s32 = sshll.u32 [#allocation2], 4
      %s33 = int_to_ptr.vmem [resolvable:$true] %s32
      %38 = dma.hbm_to_vmem [thread:$0]  %s4, 4096, %s33, [#allocation3], 128, 128, 8
    $region21: #{tpu_custom_call.1} parent=1 // pred_fallthru
      _
    // Predicated region
    $region22: #{tpu_custom_call.1} parent=1 // pred_check
      _
    $region23: #{tpu_custom_call.1} parent=1 // pred_check_branch
      %40 = sbr.rel (0) target = $region25
    $region24: #{tpu_custom_call.1} parent=1 // pred_region
      _
    $region25: #{tpu_custom_call.1} parent=1 // pred_fallthru
      _
    // Predicated region
    $region26: #{tpu_custom_call.1} parent=1 // pred_check
      _
    $region27: #{tpu_custom_call.1} parent=1 // pred_check_branch
      %42 = sbr.rel (0) target = $region29
    $region28: #{tpu_custom_call.1} parent=1 // pred_region
      _
    $region29: #{tpu_custom_call.1} parent=1 // pred_fallthru
      _
    // Predicated region
    $region30: #{tpu_custom_call.1} parent=1 // pred_check
      _
    $region31: #{tpu_custom_call.1} parent=1 // pred_check_branch
      %44 = sbr.rel (0) target = $region33
    $region32: #{tpu_custom_call.1} parent=1 // pred_region
      _
    $region33: #{tpu_custom_call.1} parent=1 // pred_fallthru
      _
    // Predicated region
    $region34: #{tpu_custom_call.1} parent=1 // pred_check
      _
    $region35: #{tpu_custom_call.1} parent=1 // pred_check_branch
      %46 = sbr.rel (0) target = $region37
    $region36: #{tpu_custom_call.1} parent=1 // pred_region
      %s48 = ssub.s32 4096, 4096
      %49 = vsyncadd [#allocation5], %s48
      %s50 = sshll.u32 [#allocation4], 4
      %s51 = int_to_ptr.vmem [resolvable:$true] %s50
      %56 = dma.hbm_to_vmem [thread:$0]  %s8, 4096, %s51, [#allocation5], 128, 128, 8
    $region37: #{tpu_custom_call.1} parent=1 // pred_fallthru
      _
    // Predicated region
    $region38: #{tpu_custom_call.1} parent=1 // pred_check
      _
    $region39: #{tpu_custom_call.1} parent=1 // pred_check_branch
      %58 = sbr.rel (0) target = $region41
    $region40: #{tpu_custom_call.1} parent=1 // pred_region
      _
    $region41: #{tpu_custom_call.1} parent=1 // pred_fallthru
      _
    // Predicated region
    $region42: #{tpu_custom_call.1} parent=1 // pred_check
      _
    $region43: #{tpu_custom_call.1} parent=1 // pred_check_branch
      %60 = sbr.rel (0) target = $region45
    $region44: #{tpu_custom_call.1} parent=1 // pred_region
      %s62 = ssub.s32 4096, 4096
      %63 = vsyncadd [#allocation5], %s62
      %s64 = sshll.u32 [#allocation6], 4
      %s65 = int_to_ptr.vmem [resolvable:$true] %s64
      %70 = dma.hbm_to_vmem [thread:$0]  %s10, 4096, %s65, [#allocation5], 128, 128, 8
    $region45: #{tpu_custom_call.1} parent=1 // pred_fallthru
      _
    // Predicated region
    $region46: #{tpu_custom_call.1} parent=1 // pred_check
      _
    $region47: #{tpu_custom_call.1} parent=1 // pred_check_branch
      %72 = sbr.rel (0) target = $region49
    $region48: #{tpu_custom_call.1} parent=1 // pred_region
      _
    $region49: #{tpu_custom_call.1} parent=1 // pred_fallthru
      _
    // Predicated region
    $region50: #{tpu_custom_call.1} parent=1 // pred_check
      _
    $region51: #{tpu_custom_call.1} parent=1 // pred_check_branch
      %74 = sbr.rel (0) target = $region53
    $region52: #{tpu_custom_call.1} parent=1 // pred_region
      %75 = dma.done [#allocation3], 4096
    $region53: #{tpu_custom_call.1} parent=1 // pred_fallthru
      _
    // Predicated region
    $region54: #{tpu_custom_call.1} parent=1 // pred_check
      _
    $region55: #{tpu_custom_call.1} parent=1 // pred_check_branch
      %77 = sbr.rel (0) target = $region57
    $region56: #{tpu_custom_call.1} parent=1 // pred_region
      %78 = dma.done [#allocation5], 4096
    $region57: #{tpu_custom_call.1} parent=1 // pred_fallthru
      _
    // Predicated region
    $region58: #{tpu_custom_call.1} parent=1 // pred_check
      _
    $region59: #{tpu_custom_call.1} parent=1 // pred_check_branch
      %80 = sbr.rel (0) target = $region61
    $region60: #{tpu_custom_call.1} parent=1 // pred_region
      %81 = dma.done [#allocation5], 4096
    $region61: #{tpu_custom_call.1} parent=1 // pred_fallthru
      _
    %v82 = vlaneseq
    %v83 = vshrl.u32 %v82, 7
    %v84 = vadd.s32 %v83, 8
    %v85 = vadd.s32 %v83, 16
    %v86 = vadd.s32 %v83, 24
    %vm87 = vcmp.lt.s32.totalorder %v83, 0
    %v88 = vsub.s32 0, %v83
    %v89 = vsel %vm87, %v88, %v83
    %v90 = vshrl.u32 %v89, 4
    %v91 = vand.u32 %v89, 15
    %v92 = vsub.s32 0, %v91
    %v93 = vsel %vm87, %v92, %v91
    %vm94 = vcmp.lt.s32.totalorder %v84, 0
    %v95 = vsub.s32 0, %v84
    %v96 = vsel %vm94, %v95, %v84
    %v97 = vshrl.u32 %v96, 4
    %v98 = vand.u32 %v96, 15
    %v99 = vsub.s32 0, %v98
    %v100 = vsel %vm94, %v99, %v98
    %vm101 = vcmp.lt.s32.totalorder %v85, 0
    %v102 = vsub.s32 0, %v85
    %v103 = vsel %vm101, %v102, %v85
    %v104 = vshrl.u32 %v103, 4
    %v105 = vand.u32 %v103, 15
    %v106 = vsub.s32 0, %v105
    %v107 = vsel %vm101, %v106, %v105
    %vm108 = vcmp.lt.s32.totalorder %v86, 0
    %v109 = vsub.s32 0, %v86
    %v110 = vsel %vm108, %v109, %v86
    %v111 = vshrl.u32 %v110, 4
    %v112 = vand.u32 %v110, 15
    %v113 = vsub.s32 0, %v112
    %v114 = vsel %vm108, %v113, %v112
    %vm115 = vcmp.ne.s32.totalorder %v93, 0
    %vm116 = vcmp.ne.s32.totalorder %v100, 0
    %vm117 = vcmp.ne.s32.totalorder %v107, 0
    %vm118 = vcmp.ne.s32.totalorder %v114, 0
    %vm119 = vcmp.lt.s32.totalorder %v93, 0
    %vm120 = vcmp.lt.s32.totalorder %v100, 0
    %vm121 = vcmp.lt.s32.totalorder %v107, 0
    %vm122 = vcmp.lt.s32.totalorder %v114, 0
    %vm123 = vmand %vm119, %vm115
    %vm124 = vmand %vm120, %vm116
    %vm125 = vmand %vm121, %vm117
    %vm126 = vmand %vm122, %vm118
    %v127 = vadd.s32 %v93, 16
    %v128 = vadd.s32 %v100, 16
    %v129 = vadd.s32 %v107, 16
    %v130 = vadd.s32 %v114, 16
    %v131 = vsel %vm123, %v127, %v93
    %v132 = vsel %vm124, %v128, %v100
    %v133 = vsel %vm125, %v129, %v107
    %v134 = vsel %vm126, %v130, %v114
    %vm135 = vcmp.ge.s32.totalorder %v131, 1
    %vm136 = vcmp.ge.s32.totalorder %v132, 1
    %vm137 = vcmp.ge.s32.totalorder %v133, 1
    %vm138 = vcmp.ge.s32.totalorder %v134, 1
    %v139 = vsel %vm135, 1, 0
    %v140 = vsel %vm136, 1, 0
    %v141 = vsel %vm137, 1, 0
    %v142 = vsel %vm138, 1, 0
    %v143 = vcvt.s32.f32 %v139
    %v144 = vcvt.s32.f32 %v140
    %v145 = vcvt.s32.f32 %v141
    %v146 = vcvt.s32.f32 %v142
    %vm147 = vcmp.ge.s32.totalorder %v131, 2
    %vm148 = vcmp.ge.s32.totalorder %v132, 2
    %vm149 = vcmp.ge.s32.totalorder %v133, 2
    %vm150 = vcmp.ge.s32.totalorder %v134, 2
    %v151 = vsel %vm147, 1, 0
    %v152 = vsel %vm148, 1, 0
    %v153 = vsel %vm149, 1, 0
    %v154 = vsel %vm150, 1, 0
    %v155 = vcvt.s32.f32 %v151
    %v156 = vcvt.s32.f32 %v152
    %v157 = vcvt.s32.f32 %v153
    %v158 = vcvt.s32.f32 %v154
    %v159 = vld [vmem:[%s0] sm:$0xff]
    %v160 = vld [vmem:[%s0 + $0x8] sm:$0xff]
    %v161 = vld [vmem:[%s0 + $0x10] sm:$0xff]
    %v162 = vld [vmem:[%s0 + $0x18] sm:$0xff]
    %v163 = vrot.slane %v159, 7
    %v164 = vrot.slane %v160, 7
    %v165 = vrot.slane %v161, 7
    %v166 = vrot.slane %v162, 7
    %vm167 = vcmp.lt.s32.totalorder %v83, 1
    %v168 = vsel %vm167, %v165, %v166
    %v169 = vsel %vm167, %v164, %v165
    %v170 = vsel %vm167, %v163, %v164
    %v171 = vsel %vm167, %v166, %v163
    %v172 = vmul.f32 %v171, %v143
    %v173 = vmul.f32 %v170, %v144
    %v174 = vmul.f32 %v169, %v145
    %v175 = vmul.f32 %v168, %v146
    %v176 = vld [vmem:[%s1] sm:$0xf]
    %v177 = vld [vmem:[%s2] sm:$0xf]
    %vm178 = vcmask 31744
    %v180 = vsel %vm178, %v172, 0
    %v183 = vsel %vm178, %v173, 0
    %v186 = vsel %vm178, %v174, 0
    %v189 = vsel %vm178, %v175, 0
    %vm191 = vcmask 1043456
    %v193 = vsel %vm191, %v177, 0
    %195 = vmatprep.subr.mxu0 0.0
    %196 = vmatpush1.msra.mxu0 %v193
    %197 = vmatprep.subr.mxu0 0.0
    %198 = vmatpush1.msra.mxu0 0.0
    %199 = vmatprep.subr.mxu0 0.0
    %200 = vmatpush1.msra.mxu0 0.0
    %201 = vmatprep.subr.mxu0 0.0
    %202 = vmatpush1.msra.mxu0 0.0
    %203 = vmatprep.subr.mxu0 0.0
    %204 = vmatpush1.msra.mxu0 0.0
    %205 = vmatprep.subr.mxu0 0.0
    %206 = vmatpush1.msra.mxu0 0.0
    %207 = vmatprep.subr.mxu0 0.0
    %208 = vmatpush1.msra.mxu0 0.0
    %209 = vmatprep.subr.mxu0 0.0
    %210 = vmatpush1.msra.mxu0 0.0
    %211 = vmatprep.subr.mxu0 0.0
    %212 = vmatpush1.msra.mxu0 0.0
    %213 = vmatprep.subr.mxu0 0.0
    %214 = vmatpush1.msra.mxu0 0.0
    %215 = vmatprep.subr.mxu0 0.0
    %216 = vmatpush1.msra.mxu0 0.0
    %217 = vmatprep.subr.mxu0 0.0
    %218 = vmatpush1.msra.mxu0 0.0
    %219 = vmatprep.subr.mxu0 0.0
    %220 = vmatpush1.msra.mxu0 0.0
    %221 = vmatprep.subr.mxu0 0.0
    %222 = vmatpush1.msra.mxu0 0.0
    %223 = vmatprep.subr.mxu0 0.0
    %224 = vmatpush1.msra.mxu0 0.0
    %225 = vmatprep.subr.mxu0 0.0
    %226 = vmatpush1.msra.mxu0 0.0
    %227 = vmatprep.subr.mxu0 0.0
    %228 = vmatpush1.msra.mxu0 0.0
    %229 = vmatprep.subr.mxu0 0.0
    %230 = vmatpush1.msra.mxu0 0.0
    %231 = vmatprep.subr.mxu0 0.0
    %232 = vmatpush1.msra.mxu0 0.0
    %233 = vmatprep.subr.mxu0 0.0
    %234 = vmatpush1.msra.mxu0 0.0
    %235 = vmatprep.subr.mxu0 0.0
    %236 = vmatpush1.msra.mxu0 0.0
    %237 = vmatprep.subr.mxu0 0.0
    %238 = vmatpush1.msra.mxu0 0.0
    %239 = vmatprep.subr.mxu0 0.0
    %240 = vmatpush1.msra.mxu0 0.0
    %241 = vmatprep.subr.mxu0 0.0
    %242 = vmatpush1.msra.mxu0 0.0
    %243 = vmatprep.subr.mxu0 0.0
    %244 = vmatpush1.msra.mxu0 0.0
    %245 = vmatprep.subr.mxu0 0.0
    %246 = vmatpush1.msra.mxu0 0.0
    %247 = vmatprep.subr.mxu0 0.0
    %248 = vmatpush1.msra.mxu0 0.0
    %249 = vmatprep.subr.mxu0 0.0
    %250 = vmatpush1.msra.mxu0 0.0
    %251 = vmatprep.subr.mxu0 0.0
    %252 = vmatpush1.msra.mxu0 0.0
    %253 = vmatprep.subr.mxu0 0.0
    %254 = vmatpush1.msra.mxu0 0.0
    %255 = vmatprep.subr.mxu0 0.0
    %256 = vmatpush1.msra.mxu0 0.0
    %257 = vmatprep.subr.mxu0 0.0
    %258 = vmatpush1.msra.mxu0 0.0
    %259 = vmatprep.mubr.f32.mxu0 0.0
    %260 = vmatmul.mubr.f32.gmra.mrb[0].mxu0 %v180
    %v261 = vpop.f32.mrb[0].mxu0
    %v262 = vadd.f32 0.0, %v261
    %v263 = vpop.f32.mrb[0].mxu0
    %264 = vmatprep.mubr.f32.mxu0 0.0
    %265 = vmatmul.mubr.f32.gmra.mrb[0].mxu0 %v183
    %v266 = vpop.f32.mrb[0].mxu0
    %v267 = vadd.f32 0.0, %v266
    %v268 = vpop.f32.mrb[0].mxu0
    %269 = vmatprep.mubr.f32.mxu0 0.0
    %270 = vmatmul.mubr.f32.gmra.mrb[0].mxu0 %v186
    %v271 = vpop.f32.mrb[0].mxu0
    %v272 = vadd.f32 0.0, %v271
    %v273 = vpop.f32.mrb[0].mxu0
    %274 = vmatprep.mubr.f32.mxu0 0.0
    %275 = vmatmul.mubr.f32.gmra.mrb[0].mxu0 %v189
    %v276 = vpop.f32.mrb[0].mxu0
    %v277 = vadd.f32 0.0, %v276
    %v278 = vpop.f32.mrb[0].mxu0
    %279 = vdwg.mxu0
    %v281 = vsel %vm178, %v159, 0
    %v284 = vsel %vm178, %v160, 0
    %v287 = vsel %vm178, %v161, 0
    %v290 = vsel %vm178, %v162, 0
    %v293 = vsel %vm191, %v176, 0
    %295 = vmatprep.subr.mxu0 0.0
    %296 = vmatpush1.msra.mxu0 %v293
    %297 = vmatprep.subr.mxu0 0.0
    %298 = vmatpush1.msra.mxu0 0.0
    %299 = vmatprep.subr.mxu0 0.0
    %300 = vmatpush1.msra.mxu0 0.0
    %301 = vmatprep.subr.mxu0 0.0
    %302 = vmatpush1.msra.mxu0 0.0
    %303 = vmatprep.subr.mxu0 0.0
    %304 = vmatpush1.msra.mxu0 0.0
    %305 = vmatprep.subr.mxu0 0.0
    %306 = vmatpush1.msra.mxu0 0.0
    %307 = vmatprep.subr.mxu0 0.0
    %308 = vmatpush1.msra.mxu0 0.0
    %309 = vmatprep.subr.mxu0 0.0
    %310 = vmatpush1.msra.mxu0 0.0
    %311 = vmatprep.subr.mxu0 0.0
    %312 = vmatpush1.msra.mxu0 0.0
    %313 = vmatprep.subr.mxu0 0.0
    %314 = vmatpush1.msra.mxu0 0.0
    %315 = vmatprep.subr.mxu0 0.0
    %316 = vmatpush1.msra.mxu0 0.0
    %317 = vmatprep.subr.mxu0 0.0
    %318 = vmatpush1.msra.mxu0 0.0
    %319 = vmatprep.subr.mxu0 0.0
    %320 = vmatpush1.msra.mxu0 0.0
    %321 = vmatprep.subr.mxu0 0.0
    %322 = vmatpush1.msra.mxu0 0.0
    %323 = vmatprep.subr.mxu0 0.0
    %324 = vmatpush1.msra.mxu0 0.0
    %325 = vmatprep.subr.mxu0 0.0
    %326 = vmatpush1.msra.mxu0 0.0
    %327 = vmatprep.subr.mxu0 0.0
    %328 = vmatpush1.msra.mxu0 0.0
    %329 = vmatprep.subr.mxu0 0.0
    %330 = vmatpush1.msra.mxu0 0.0
    %331 = vmatprep.subr.mxu0 0.0
    %332 = vmatpush1.msra.mxu0 0.0
    %333 = vmatprep.subr.mxu0 0.0
    %334 = vmatpush1.msra.mxu0 0.0
    %335 = vmatprep.subr.mxu0 0.0
    %336 = vmatpush1.msra.mxu0 0.0
    %337 = vmatprep.subr.mxu0 0.0
    %338 = vmatpush1.msra.mxu0 0.0
    %339 = vmatprep.subr.mxu0 0.0
    %340 = vmatpush1.msra.mxu0 0.0
    %341 = vmatprep.subr.mxu0 0.0
    %342 = vmatpush1.msra.mxu0 0.0
    %343 = vmatprep.subr.mxu0 0.0
    %344 = vmatpush1.msra.mxu0 0.0
    %345 = vmatprep.subr.mxu0 0.0
    %346 = vmatpush1.msra.mxu0 0.0
    %347 = vmatprep.subr.mxu0 0.0
    %348 = vmatpush1.msra.mxu0 0.0
    %349 = vmatprep.subr.mxu0 0.0
    %350 = vmatpush1.msra.mxu0 0.0
    %351 = vmatprep.subr.mxu0 0.0
    %352 = vmatpush1.msra.mxu0 0.0
    %353 = vmatprep.subr.mxu0 0.0
    %354 = vmatpush1.msra.mxu0 0.0
    %355 = vmatprep.subr.mxu0 0.0
    %356 = vmatpush1.msra.mxu0 0.0
    %357 = vmatprep.subr.mxu0 0.0
    %358 = vmatpush1.msra.mxu0 0.0
    %359 = vmatprep.mubr.f32.mxu0 0.0
    %360 = vmatmul.mubr.f32.gmra.mrb[0].mxu0 %v281
    %v361 = vpop.f32.mrb[0].mxu0
    %v362 = vadd.f32 %v262, %v361
    %v363 = vpop.f32.mrb[0].mxu0
    %364 = vmatprep.mubr.f32.mxu0 0.0
    %365 = vmatmul.mubr.f32.gmra.mrb[0].mxu0 %v284
    %v366 = vpop.f32.mrb[0].mxu0
    %v367 = vadd.f32 %v267, %v366
    %v368 = vpop.f32.mrb[0].mxu0
    %369 = vmatprep.mubr.f32.mxu0 0.0
    %370 = vmatmul.mubr.f32.gmra.mrb[0].mxu0 %v287
    %v371 = vpop.f32.mrb[0].mxu0
    %v372 = vadd.f32 %v272, %v371
    %v373 = vpop.f32.mrb[0].mxu0
    %374 = vmatprep.mubr.f32.mxu0 0.0
    %375 = vmatmul.mubr.f32.gmra.mrb[0].mxu0 %v290
    %v376 = vpop.f32.mrb[0].mxu0
    %v377 = vadd.f32 %v277, %v376
    %v378 = vpop.f32.mrb[0].mxu0
    %379 = vdwg.mxu0
    %v380 = vld [vmem:[%s3] sm:$0x1]
    %v382 = vlaneseq
    %v383 = vshrl.u32 %v382, 7
    %v384 = vsub.s32 0, %v383
    %v385 = vrot.slane %v380, %v384
    %v387 = vadd.f32 %v362, %v385
    %v388 = vadd.f32 %v367, %v385
    %v389 = vadd.f32 %v372, %v385
    %v390 = vadd.f32 %v377, %v385
    %v391 = vmax.f32 %v387, 0.0
    %v392 = vmax.f32 %v388, 0.0
    %v393 = vmax.f32 %v389, 0.0
    %v394 = vmax.f32 %v390, 0.0
    %v395 = vrot.slane %v391, 7
    %v396 = vrot.slane %v392, 7
    %v397 = vrot.slane %v393, 7
    %v398 = vrot.slane %v394, 7
    %v399 = vsel %vm167, %v397, %v398
    %v400 = vsel %vm167, %v396, %v397
    %v401 = vsel %vm167, %v395, %v396
    %v402 = vsel %vm167, %v398, %v395
    %v403 = vmul.f32 %v402, %v143
    %v404 = vmul.f32 %v401, %v144
    %v405 = vmul.f32 %v400, %v145
    %v406 = vmul.f32 %v399, %v146
    %v407 = vld [vmem:[#allocation2] sm:$0xff]
    %v408 = vld [vmem:[#allocation2 + $0x8] sm:$0xff]
    %v409 = vld [vmem:[#allocation2 + $0x10] sm:$0xff]
    %v410 = vld [vmem:[#allocation2 + $0x18] sm:$0xff]
    %v411 = vld [vmem:[#allocation2 + $0x20] sm:$0xff]
    %v412 = vld [vmem:[#allocation2 + $0x28] sm:$0xff]
    %v413 = vld [vmem:[#allocation2 + $0x30] sm:$0xff]
    %v414 = vld [vmem:[#allocation2 + $0x38] sm:$0xff]
    %v415 = vld [vmem:[#allocation2 + $0x40] sm:$0xff]
    %v416 = vld [vmem:[#allocation2 + $0x48] sm:$0xff]
    %v417 = vld [vmem:[#allocation2 + $0x50] sm:$0xff]
    %v418 = vld [vmem:[#allocation2 + $0x58] sm:$0xff]
    %v419 = vld [vmem:[#allocation2 + $0x60] sm:$0xff]
    %v420 = vld [vmem:[#allocation2 + $0x68] sm:$0xff]
    %v421 = vld [vmem:[#allocation2 + $0x70] sm:$0xff]
    %v422 = vld [vmem:[#allocation2 + $0x78] sm:$0xff]
    %v423 = vld [vmem:[#allocation2 + $0x80] sm:$0xff]
    %v424 = vld [vmem:[#allocation2 + $0x88] sm:$0xff]
    %v425 = vld [vmem:[#allocation2 + $0x90] sm:$0xff]
    %v426 = vld [vmem:[#allocation2 + $0x98] sm:$0xff]
    %v427 = vld [vmem:[#allocation2 + $0xa0] sm:$0xff]
    %v428 = vld [vmem:[#allocation2 + $0xa8] sm:$0xff]
    %v429 = vld [vmem:[#allocation2 + $0xb0] sm:$0xff]
    %v430 = vld [vmem:[#allocation2 + $0xb8] sm:$0xff]
    %v431 = vld [vmem:[#allocation2 + $0xc0] sm:$0xff]
    %v432 = vld [vmem:[#allocation2 + $0xc8] sm:$0xff]
    %v433 = vld [vmem:[#allocation2 + $0xd0] sm:$0xff]
    %v434 = vld [vmem:[#allocation2 + $0xd8] sm:$0xff]
    %v435 = vld [vmem:[#allocation2 + $0xe0] sm:$0xff]
    %v436 = vld [vmem:[#allocation2 + $0xe8] sm:$0xff]
    %v437 = vld [vmem:[#allocation2 + $0xf0] sm:$0xff]
    %v438 = vld [vmem:[#allocation2 + $0xf8] sm:$0xff]
    %v439 = vld [vmem:[%s5] sm:$0x1]
    %v441 = vlaneseq
    %v442 = vshrl.u32 %v441, 7
    %v443 = vsub.s32 0, %v442
    %v444 = vrot.slane %v439, %v443
    %446 = vmatprep.subr.mxu0 0.0
    %447 = vmatpush1.msra.mxu0 %v407
    %448 = vmatprep.subr.mxu0 0.0
    %449 = vmatpush1.msra.mxu0 %v408
    %450 = vmatprep.subr.mxu0 0.0
    %451 = vmatpush1.msra.mxu0 %v409
    %452 = vmatprep.subr.mxu0 0.0
    %453 = vmatpush1.msra.mxu0 %v410
    %454 = vmatprep.subr.mxu0 0.0
    %455 = vmatpush1.msra.mxu0 %v411
    %456 = vmatprep.subr.mxu0 0.0
    %457 = vmatpush1.msra.mxu0 %v412
    %458 = vmatprep.subr.mxu0 0.0
    %459 = vmatpush1.msra.mxu0 %v413
    %460 = vmatprep.subr.mxu0 0.0
    %461 = vmatpush1.msra.mxu0 %v414
    %462 = vmatprep.subr.mxu0 0.0
    %463 = vmatpush1.msra.mxu0 %v415
    %464 = vmatprep.subr.mxu0 0.0
    %465 = vmatpush1.msra.mxu0 %v416
    %466 = vmatprep.subr.mxu0 0.0
    %467 = vmatpush1.msra.mxu0 %v417
    %468 = vmatprep.subr.mxu0 0.0
    %469 = vmatpush1.msra.mxu0 %v418
    %470 = vmatprep.subr.mxu0 0.0
    %471 = vmatpush1.msra.mxu0 %v419
    %472 = vmatprep.subr.mxu0 0.0
    %473 = vmatpush1.msra.mxu0 %v420
    %474 = vmatprep.subr.mxu0 0.0
    %475 = vmatpush1.msra.mxu0 %v421
    %476 = vmatprep.subr.mxu0 0.0
    %477 = vmatpush1.msra.mxu0 %v422
    %478 = vmatprep.subr.mxu0 0.0
    %479 = vmatpush1.msra.mxu0 %v423
    %480 = vmatprep.subr.mxu0 0.0
    %481 = vmatpush1.msra.mxu0 %v424
    %482 = vmatprep.subr.mxu0 0.0
    %483 = vmatpush1.msra.mxu0 %v425
    %484 = vmatprep.subr.mxu0 0.0
    %485 = vmatpush1.msra.mxu0 %v426
    %486 = vmatprep.subr.mxu0 0.0
    %487 = vmatpush1.msra.mxu0 %v427
    %488 = vmatprep.subr.mxu0 0.0
    %489 = vmatpush1.msra.mxu0 %v428
    %490 = vmatprep.subr.mxu0 0.0
    %491 = vmatpush1.msra.mxu0 %v429
    %492 = vmatprep.subr.mxu0 0.0
    %493 = vmatpush1.msra.mxu0 %v430
    %494 = vmatprep.subr.mxu0 0.0
    %495 = vmatpush1.msra.mxu0 %v431
    %496 = vmatprep.subr.mxu0 0.0
    %497 = vmatpush1.msra.mxu0 %v432
    %498 = vmatprep.subr.mxu0 0.0
    %499 = vmatpush1.msra.mxu0 %v433
    %500 = vmatprep.subr.mxu0 0.0
    %501 = vmatpush1.msra.mxu0 %v434
    %502 = vmatprep.subr.mxu0 0.0
    %503 = vmatpush1.msra.mxu0 %v435
    %504 = vmatprep.subr.mxu0 0.0
    %505 = vmatpush1.msra.mxu0 %v436
    %506 = vmatprep.subr.mxu0 0.0
    %507 = vmatpush1.msra.mxu0 %v437
    %508 = vmatprep.subr.mxu0 0.0
    %509 = vmatpush1.msra.mxu0 %v438
    %510 = vmatprep.mubr.f32.mxu0 %v403
    %511 = vmatmul.mubr.f32.gmra.mrb[0].mxu0 %v391
    %v512 = vpop.f32.mrb[0].mxu0
    %v513 = vadd.f32 %v444, %v512
    %v514 = vpop.f32.mrb[0].mxu0
    %515 = vmatprep.mubr.f32.mxu0 %v404
    %516 = vmatmul.mubr.f32.gmra.mrb[0].mxu0 %v392
    %v517 = vpop.f32.mrb[0].mxu0
    %v518 = vadd.f32 %v444, %v517
    %v519 = vpop.f32.mrb[0].mxu0
    %520 = vmatprep.mubr.f32.mxu0 %v405
    %521 = vmatmul.mubr.f32.gmra.mrb[0].mxu0 %v393
    %v522 = vpop.f32.mrb[0].mxu0
    %v523 = vadd.f32 %v444, %v522
    %v524 = vpop.f32.mrb[0].mxu0
    %525 = vmatprep.mubr.f32.mxu0 %v406
    %526 = vmatmul.mubr.f32.gmra.mrb[0].mxu0 %v394
    %v527 = vpop.f32.mrb[0].mxu0
    %v528 = vadd.f32 %v444, %v527
    %v529 = vpop.f32.mrb[0].mxu0
    %530 = vdwg.mxu0
    %v531 = vmax.f32 %v513, 0.0
    %v532 = vmax.f32 %v518, 0.0
    %v533 = vmax.f32 %v523, 0.0
    %v534 = vmax.f32 %v528, 0.0
    %v535 = vld [vmem:[%s6] sm:$0xf]
    %v536 = vld [vmem:[%s7] sm:$0x1]
    %v538 = vlaneseq
    %v539 = vshrl.u32 %v538, 7
    %v540 = vsub.s32 0, %v539
    %v541 = vrot.slane %v536, %v540
    %v544 = vsel %vm191, %v535, 0
    %546 = vmatprep.subr.mxu0 0.0
    %547 = vmatpush1.msra.mxu0 %v544
    %548 = vmatprep.subr.mxu0 0.0
    %549 = vmatpush1.msra.mxu0 0.0
    %550 = vmatprep.subr.mxu0 0.0
    %551 = vmatpush1.msra.mxu0 0.0
    %552 = vmatprep.subr.mxu0 0.0
    %553 = vmatpush1.msra.mxu0 0.0
    %554 = vmatprep.subr.mxu0 0.0
    %555 = vmatpush1.msra.mxu0 0.0
    %556 = vmatprep.subr.mxu0 0.0
    %557 = vmatpush1.msra.mxu0 0.0
    %558 = vmatprep.subr.mxu0 0.0
    %559 = vmatpush1.msra.mxu0 0.0
    %560 = vmatprep.subr.mxu0 0.0
    %561 = vmatpush1.msra.mxu0 0.0
    %562 = vmatprep.subr.mxu0 0.0
    %563 = vmatpush1.msra.mxu0 0.0
    %564 = vmatprep.subr.mxu0 0.0
    %565 = vmatpush1.msra.mxu0 0.0
    %566 = vmatprep.subr.mxu0 0.0
    %567 = vmatpush1.msra.mxu0 0.0
    %568 = vmatprep.subr.mxu0 0.0
    %569 = vmatpush1.msra.mxu0 0.0
    %570 = vmatprep.subr.mxu0 0.0
    %571 = vmatpush1.msra.mxu0 0.0
    %572 = vmatprep.subr.mxu0 0.0
    %573 = vmatpush1.msra.mxu0 0.0
    %574 = vmatprep.subr.mxu0 0.0
    %575 = vmatpush1.msra.mxu0 0.0
    %576 = vmatprep.subr.mxu0 0.0
    %577 = vmatpush1.msra.mxu0 0.0
    %578 = vmatprep.subr.mxu0 0.0
    %579 = vmatpush1.msra.mxu0 0.0
    %580 = vmatprep.subr.mxu0 0.0
    %581 = vmatpush1.msra.mxu0 0.0
    %582 = vmatprep.subr.mxu0 0.0
    %583 = vmatpush1.msra.mxu0 0.0
    %584 = vmatprep.subr.mxu0 0.0
    %585 = vmatpush1.msra.mxu0 0.0
    %586 = vmatprep.subr.mxu0 0.0
    %587 = vmatpush1.msra.mxu0 0.0
    %588 = vmatprep.subr.mxu0 0.0
    %589 = vmatpush1.msra.mxu0 0.0
    %590 = vmatprep.subr.mxu0 0.0
    %591 = vmatpush1.msra.mxu0 0.0
    %592 = vmatprep.subr.mxu0 0.0
    %593 = vmatpush1.msra.mxu0 0.0
    %594 = vmatprep.subr.mxu0 0.0
    %595 = vmatpush1.msra.mxu0 0.0
    %596 = vmatprep.subr.mxu0 0.0
    %597 = vmatpush1.msra.mxu0 0.0
    %598 = vmatprep.subr.mxu0 0.0
    %599 = vmatpush1.msra.mxu0 0.0
    %600 = vmatprep.subr.mxu0 0.0
    %601 = vmatpush1.msra.mxu0 0.0
    %602 = vmatprep.subr.mxu0 0.0
    %603 = vmatpush1.msra.mxu0 0.0
    %604 = vmatprep.subr.mxu0 0.0
    %605 = vmatpush1.msra.mxu0 0.0
    %606 = vmatprep.subr.mxu0 0.0
    %607 = vmatpush1.msra.mxu0 0.0
    %608 = vmatprep.subr.mxu0 0.0
    %609 = vmatpush1.msra.mxu0 0.0
    %610 = vmatprep.mubr.f32.mxu0 0.0
    %611 = vmatmul.mubr.f32.gmra.mrb[0].mxu0 %v281
    %v612 = vpop.f32.mrb[0].mxu0
    %v613 = vadd.f32 %v541, %v612
    %v614 = vpop.f32.mrb[0].mxu0
    %615 = vmatprep.mubr.f32.mxu0 0.0
    %616 = vmatmul.mubr.f32.gmra.mrb[0].mxu0 %v284
    %v617 = vpop.f32.mrb[0].mxu0
    %v618 = vadd.f32 %v541, %v617
    %v619 = vpop.f32.mrb[0].mxu0
    %620 = vmatprep.mubr.f32.mxu0 0.0
    %621 = vmatmul.mubr.f32.gmra.mrb[0].mxu0 %v287
    %v622 = vpop.f32.mrb[0].mxu0
    %v623 = vadd.f32 %v541, %v622
    %v624 = vpop.f32.mrb[0].mxu0
    %625 = vmatprep.mubr.f32.mxu0 0.0
    %626 = vmatmul.mubr.f32.gmra.mrb[0].mxu0 %v290
    %v627 = vpop.f32.mrb[0].mxu0
    %v628 = vadd.f32 %v541, %v627
    %v629 = vpop.f32.mrb[0].mxu0
    %630 = vdwg.mxu0
    %v631 = vadd.f32 %v531, %v613
    %v632 = vadd.f32 %v532, %v618
    %v633 = vadd.f32 %v533, %v623
    %v634 = vadd.f32 %v534, %v628
    %v635 = vmax.f32 %v631, 0.0
    %v636 = vmax.f32 %v632, 0.0
    %v637 = vmax.f32 %v633, 0.0
    %v638 = vmax.f32 %v634, 0.0
    %v639 = vrot.slane %v635, 6
    %v640 = vrot.slane %v636, 6
    %v641 = vrot.slane %v637, 6
    %v642 = vrot.slane %v638, 6
    %vm643 = vcmp.lt.s32.totalorder %v83, 2
    %v644 = vsel %vm643, %v641, %v642
    %v645 = vsel %vm643, %v640, %v641
    %v646 = vsel %vm643, %v639, %v640
    %v647 = vsel %vm643, %v642, %v639
    %v648 = vmul.f32 %v647, %v155
    %v649 = vmul.f32 %v646, %v156
    %v650 = vmul.f32 %v645, %v157
    %v651 = vmul.f32 %v644, %v158
    %v652 = vld [vmem:[#allocation4] sm:$0xff]
    %v653 = vld [vmem:[#allocation4 + $0x8] sm:$0xff]
    %v654 = vld [vmem:[#allocation4 + $0x10] sm:$0xff]
    %v655 = vld [vmem:[#allocation4 + $0x18] sm:$0xff]
    %v656 = vld [vmem:[#allocation4 + $0x20] sm:$0xff]
    %v657 = vld [vmem:[#allocation4 + $0x28] sm:$0xff]
    %v658 = vld [vmem:[#allocation4 + $0x30] sm:$0xff]
    %v659 = vld [vmem:[#allocation4 + $0x38] sm:$0xff]
    %v660 = vld [vmem:[#allocation4 + $0x40] sm:$0xff]
    %v661 = vld [vmem:[#allocation4 + $0x48] sm:$0xff]
    %v662 = vld [vmem:[#allocation4 + $0x50] sm:$0xff]
    %v663 = vld [vmem:[#allocation4 + $0x58] sm:$0xff]
    %v664 = vld [vmem:[#allocation4 + $0x60] sm:$0xff]
    %v665 = vld [vmem:[#allocation4 + $0x68] sm:$0xff]
    %v666 = vld [vmem:[#allocation4 + $0x70] sm:$0xff]
    %v667 = vld [vmem:[#allocation4 + $0x78] sm:$0xff]
    %v668 = vld [vmem:[#allocation4 + $0x80] sm:$0xff]
    %v669 = vld [vmem:[#allocation4 + $0x88] sm:$0xff]
    %v670 = vld [vmem:[#allocation4 + $0x90] sm:$0xff]
    %v671 = vld [vmem:[#allocation4 + $0x98] sm:$0xff]
    %v672 = vld [vmem:[#allocation4 + $0xa0] sm:$0xff]
    %v673 = vld [vmem:[#allocation4 + $0xa8] sm:$0xff]
    %v674 = vld [vmem:[#allocation4 + $0xb0] sm:$0xff]
    %v675 = vld [vmem:[#allocation4 + $0xb8] sm:$0xff]
    %v676 = vld [vmem:[#allocation4 + $0xc0] sm:$0xff]
    %v677 = vld [vmem:[#allocation4 + $0xc8] sm:$0xff]
    %v678 = vld [vmem:[#allocation4 + $0xd0] sm:$0xff]
    %v679 = vld [vmem:[#allocation4 + $0xd8] sm:$0xff]
    %v680 = vld [vmem:[#allocation4 + $0xe0] sm:$0xff]
    %v681 = vld [vmem:[#allocation4 + $0xe8] sm:$0xff]
    %v682 = vld [vmem:[#allocation4 + $0xf0] sm:$0xff]
    %v683 = vld [vmem:[#allocation4 + $0xf8] sm:$0xff]
    %v684 = vld [vmem:[%s9] sm:$0x1]
    %v686 = vlaneseq
    %v687 = vshrl.u32 %v686, 7
    %v688 = vsub.s32 0, %v687
    %v689 = vrot.slane %v684, %v688
    %691 = vmatprep.subr.mxu0 0.0
    %692 = vmatpush1.msra.mxu0 %v652
    %693 = vmatprep.subr.mxu0 0.0
    %694 = vmatpush1.msra.mxu0 %v653
    %695 = vmatprep.subr.mxu0 0.0
    %696 = vmatpush1.msra.mxu0 %v654
    %697 = vmatprep.subr.mxu0 0.0
    %698 = vmatpush1.msra.mxu0 %v655
    %699 = vmatprep.subr.mxu0 0.0
    %700 = vmatpush1.msra.mxu0 %v656
    %701 = vmatprep.subr.mxu0 0.0
    %702 = vmatpush1.msra.mxu0 %v657
    %703 = vmatprep.subr.mxu0 0.0
    %704 = vmatpush1.msra.mxu0 %v658
    %705 = vmatprep.subr.mxu0 0.0
    %706 = vmatpush1.msra.mxu0 %v659
    %707 = vmatprep.subr.mxu0 0.0
    %708 = vmatpush1.msra.mxu0 %v660
    %709 = vmatprep.subr.mxu0 0.0
    %710 = vmatpush1.msra.mxu0 %v661
    %711 = vmatprep.subr.mxu0 0.0
    %712 = vmatpush1.msra.mxu0 %v662
    %713 = vmatprep.subr.mxu0 0.0
    %714 = vmatpush1.msra.mxu0 %v663
    %715 = vmatprep.subr.mxu0 0.0
    %716 = vmatpush1.msra.mxu0 %v664
    %717 = vmatprep.subr.mxu0 0.0
    %718 = vmatpush1.msra.mxu0 %v665
    %719 = vmatprep.subr.mxu0 0.0
    %720 = vmatpush1.msra.mxu0 %v666
    %721 = vmatprep.subr.mxu0 0.0
    %722 = vmatpush1.msra.mxu0 %v667
    %723 = vmatprep.subr.mxu0 0.0
    %724 = vmatpush1.msra.mxu0 %v668
    %725 = vmatprep.subr.mxu0 0.0
    %726 = vmatpush1.msra.mxu0 %v669
    %727 = vmatprep.subr.mxu0 0.0
    %728 = vmatpush1.msra.mxu0 %v670
    %729 = vmatprep.subr.mxu0 0.0
    %730 = vmatpush1.msra.mxu0 %v671
    %731 = vmatprep.subr.mxu0 0.0
    %732 = vmatpush1.msra.mxu0 %v672
    %733 = vmatprep.subr.mxu0 0.0
    %734 = vmatpush1.msra.mxu0 %v673
    %735 = vmatprep.subr.mxu0 0.0
    %736 = vmatpush1.msra.mxu0 %v674
    %737 = vmatprep.subr.mxu0 0.0
    %738 = vmatpush1.msra.mxu0 %v675
    %739 = vmatprep.subr.mxu0 0.0
    %740 = vmatpush1.msra.mxu0 %v676
    %741 = vmatprep.subr.mxu0 0.0
    %742 = vmatpush1.msra.mxu0 %v677
    %743 = vmatprep.subr.mxu0 0.0
    %744 = vmatpush1.msra.mxu0 %v678
    %745 = vmatprep.subr.mxu0 0.0
    %746 = vmatpush1.msra.mxu0 %v679
    %747 = vmatprep.subr.mxu0 0.0
    %748 = vmatpush1.msra.mxu0 %v680
    %749 = vmatprep.subr.mxu0 0.0
    %750 = vmatpush1.msra.mxu0 %v681
    %751 = vmatprep.subr.mxu0 0.0
    %752 = vmatpush1.msra.mxu0 %v682
    %753 = vmatprep.subr.mxu0 0.0
    %754 = vmatpush1.msra.mxu0 %v683
    %755 = vmatprep.mubr.f32.mxu0 %v648
    %756 = vmatmul.mubr.f32.gmra.mrb[0].mxu0 %v635
    %v757 = vpop.f32.mrb[0].mxu0
    %v758 = vadd.f32 %v689, %v757
    %v759 = vpop.f32.mrb[0].mxu0
    %760 = vmatprep.mubr.f32.mxu0 %v649
    %761 = vmatmul.mubr.f32.gmra.mrb[0].mxu0 %v636
    %v762 = vpop.f32.mrb[0].mxu0
    %v763 = vadd.f32 %v689, %v762
    %v764 = vpop.f32.mrb[0].mxu0
    %765 = vmatprep.mubr.f32.mxu0 %v650
    %766 = vmatmul.mubr.f32.gmra.mrb[0].mxu0 %v637
    %v767 = vpop.f32.mrb[0].mxu0
    %v768 = vadd.f32 %v689, %v767
    %v769 = vpop.f32.mrb[0].mxu0
    %770 = vmatprep.mubr.f32.mxu0 %v651
    %771 = vmatmul.mubr.f32.gmra.mrb[0].mxu0 %v638
    %v772 = vpop.f32.mrb[0].mxu0
    %v773 = vadd.f32 %v689, %v772
    %v774 = vpop.f32.mrb[0].mxu0
    %775 = vdwg.mxu0
    %v776 = vmax.f32 %v758, 0.0
    %v777 = vmax.f32 %v763, 0.0
    %v778 = vmax.f32 %v768, 0.0
    %v779 = vmax.f32 %v773, 0.0
    %v780 = vrot.slane %v776, 6
    %v781 = vrot.slane %v777, 6
    %v782 = vrot.slane %v778, 6
    %v783 = vrot.slane %v779, 6
    %v784 = vsel %vm643, %v782, %v783
    %v785 = vsel %vm643, %v781, %v782
    %v786 = vsel %vm643, %v780, %v781
    %v787 = vsel %vm643, %v783, %v780
    %v788 = vmul.f32 %v787, %v155
    %v789 = vmul.f32 %v786, %v156
    %v790 = vmul.f32 %v785, %v157
    %v791 = vmul.f32 %v784, %v158
    %v792 = vld [vmem:[#allocation6] sm:$0xff]
    %v793 = vld [vmem:[#allocation6 + $0x8] sm:$0xff]
    %v794 = vld [vmem:[#allocation6 + $0x10] sm:$0xff]
    %v795 = vld [vmem:[#allocation6 + $0x18] sm:$0xff]
    %v796 = vld [vmem:[#allocation6 + $0x20] sm:$0xff]
    %v797 = vld [vmem:[#allocation6 + $0x28] sm:$0xff]
    %v798 = vld [vmem:[#allocation6 + $0x30] sm:$0xff]
    %v799 = vld [vmem:[#allocation6 + $0x38] sm:$0xff]
    %v800 = vld [vmem:[#allocation6 + $0x40] sm:$0xff]
    %v801 = vld [vmem:[#allocation6 + $0x48] sm:$0xff]
    %v802 = vld [vmem:[#allocation6 + $0x50] sm:$0xff]
    %v803 = vld [vmem:[#allocation6 + $0x58] sm:$0xff]
    %v804 = vld [vmem:[#allocation6 + $0x60] sm:$0xff]
    %v805 = vld [vmem:[#allocation6 + $0x68] sm:$0xff]
    %v806 = vld [vmem:[#allocation6 + $0x70] sm:$0xff]
    %v807 = vld [vmem:[#allocation6 + $0x78] sm:$0xff]
    %v808 = vld [vmem:[#allocation6 + $0x80] sm:$0xff]
    %v809 = vld [vmem:[#allocation6 + $0x88] sm:$0xff]
    %v810 = vld [vmem:[#allocation6 + $0x90] sm:$0xff]
    %v811 = vld [vmem:[#allocation6 + $0x98] sm:$0xff]
    %v812 = vld [vmem:[#allocation6 + $0xa0] sm:$0xff]
    %v813 = vld [vmem:[#allocation6 + $0xa8] sm:$0xff]
    %v814 = vld [vmem:[#allocation6 + $0xb0] sm:$0xff]
    %v815 = vld [vmem:[#allocation6 + $0xb8] sm:$0xff]
    %v816 = vld [vmem:[#allocation6 + $0xc0] sm:$0xff]
    %v817 = vld [vmem:[#allocation6 + $0xc8] sm:$0xff]
    %v818 = vld [vmem:[#allocation6 + $0xd0] sm:$0xff]
    %v819 = vld [vmem:[#allocation6 + $0xd8] sm:$0xff]
    %v820 = vld [vmem:[#allocation6 + $0xe0] sm:$0xff]
    %v821 = vld [vmem:[#allocation6 + $0xe8] sm:$0xff]
    %v822 = vld [vmem:[#allocation6 + $0xf0] sm:$0xff]
    %v823 = vld [vmem:[#allocation6 + $0xf8] sm:$0xff]
    %v824 = vld [vmem:[%s11] sm:$0x1]
    %v826 = vlaneseq
    %v827 = vshrl.u32 %v826, 7
    %v828 = vsub.s32 0, %v827
    %v829 = vrot.slane %v824, %v828
    %831 = vmatprep.subr.mxu0 0.0
    %832 = vmatpush1.msra.mxu0 %v792
    %833 = vmatprep.subr.mxu0 0.0
    %834 = vmatpush1.msra.mxu0 %v793
    %835 = vmatprep.subr.mxu0 0.0
    %836 = vmatpush1.msra.mxu0 %v794
    %837 = vmatprep.subr.mxu0 0.0
    %838 = vmatpush1.msra.mxu0 %v795
    %839 = vmatprep.subr.mxu0 0.0
    %840 = vmatpush1.msra.mxu0 %v796
    %841 = vmatprep.subr.mxu0 0.0
    %842 = vmatpush1.msra.mxu0 %v797
    %843 = vmatprep.subr.mxu0 0.0
    %844 = vmatpush1.msra.mxu0 %v798
    %845 = vmatprep.subr.mxu0 0.0
    %846 = vmatpush1.msra.mxu0 %v799
    %847 = vmatprep.subr.mxu0 0.0
    %848 = vmatpush1.msra.mxu0 %v800
    %849 = vmatprep.subr.mxu0 0.0
    %850 = vmatpush1.msra.mxu0 %v801
    %851 = vmatprep.subr.mxu0 0.0
    %852 = vmatpush1.msra.mxu0 %v802
    %853 = vmatprep.subr.mxu0 0.0
    %854 = vmatpush1.msra.mxu0 %v803
    %855 = vmatprep.subr.mxu0 0.0
    %856 = vmatpush1.msra.mxu0 %v804
    %857 = vmatprep.subr.mxu0 0.0
    %858 = vmatpush1.msra.mxu0 %v805
    %859 = vmatprep.subr.mxu0 0.0
    %860 = vmatpush1.msra.mxu0 %v806
    %861 = vmatprep.subr.mxu0 0.0
    %862 = vmatpush1.msra.mxu0 %v807
    %863 = vmatprep.subr.mxu0 0.0
    %864 = vmatpush1.msra.mxu0 %v808
    %865 = vmatprep.subr.mxu0 0.0
    %866 = vmatpush1.msra.mxu0 %v809
    %867 = vmatprep.subr.mxu0 0.0
    %868 = vmatpush1.msra.mxu0 %v810
    %869 = vmatprep.subr.mxu0 0.0
    %870 = vmatpush1.msra.mxu0 %v811
    %871 = vmatprep.subr.mxu0 0.0
    %872 = vmatpush1.msra.mxu0 %v812
    %873 = vmatprep.subr.mxu0 0.0
    %874 = vmatpush1.msra.mxu0 %v813
    %875 = vmatprep.subr.mxu0 0.0
    %876 = vmatpush1.msra.mxu0 %v814
    %877 = vmatprep.subr.mxu0 0.0
    %878 = vmatpush1.msra.mxu0 %v815
    %879 = vmatprep.subr.mxu0 0.0
    %880 = vmatpush1.msra.mxu0 %v816
    %881 = vmatprep.subr.mxu0 0.0
    %882 = vmatpush1.msra.mxu0 %v817
    %883 = vmatprep.subr.mxu0 0.0
    %884 = vmatpush1.msra.mxu0 %v818
    %885 = vmatprep.subr.mxu0 0.0
    %886 = vmatpush1.msra.mxu0 %v819
    %887 = vmatprep.subr.mxu0 0.0
    %888 = vmatpush1.msra.mxu0 %v820
    %889 = vmatprep.subr.mxu0 0.0
    %890 = vmatpush1.msra.mxu0 %v821
    %891 = vmatprep.subr.mxu0 0.0
    %892 = vmatpush1.msra.mxu0 %v822
    %893 = vmatprep.subr.mxu0 0.0
    %894 = vmatpush1.msra.mxu0 %v823
    %895 = vmatprep.mubr.f32.mxu0 %v788
    %896 = vmatmul.mubr.f32.gmra.mrb[0].mxu0 %v776
    %v897 = vpop.f32.mrb[0].mxu0
    %v898 = vadd.f32 %v829, %v897
    %v899 = vpop.f32.mrb[0].mxu0
    %900 = vmatprep.mubr.f32.mxu0 %v789
    %901 = vmatmul.mubr.f32.gmra.mrb[0].mxu0 %v777
    %v902 = vpop.f32.mrb[0].mxu0
    %v903 = vadd.f32 %v829, %v902
    %v904 = vpop.f32.mrb[0].mxu0
    %905 = vmatprep.mubr.f32.mxu0 %v790
    %906 = vmatmul.mubr.f32.gmra.mrb[0].mxu0 %v778
    %v907 = vpop.f32.mrb[0].mxu0
    %v908 = vadd.f32 %v829, %v907
    %v909 = vpop.f32.mrb[0].mxu0
    %910 = vmatprep.mubr.f32.mxu0 %v791
    %911 = vmatmul.mubr.f32.gmra.mrb[0].mxu0 %v779
    %v912 = vpop.f32.mrb[0].mxu0
    %v913 = vadd.f32 %v829, %v912
    %v914 = vpop.f32.mrb[0].mxu0
    %915 = vdwg.mxu0
    %v916 = vmax.f32 %v898, 0.0
    %v917 = vmax.f32 %v903, 0.0
    %v918 = vmax.f32 %v908, 0.0
    %v919 = vmax.f32 %v913, 0.0
    %v920 = vadd.f32 %v916, %v635
    %v921 = vadd.f32 %v917, %v636
    %v922 = vadd.f32 %v918, %v637
    %v923 = vadd.f32 %v919, %v638
    %v924 = vmax.f32 %v920, 0.0
    %v925 = vmax.f32 %v921, 0.0
    %v926 = vmax.f32 %v922, 0.0
    %v927 = vmax.f32 %v923, 0.0
    %vm928 = vcmask 64512
    %929 = vst.msk [vmem:[%s12] sm:$0xff] %vm928, %v924
    %930 = vst.msk [vmem:[%s12 + $0x8] sm:$0xff] %vm928, %v925
    %931 = vst.msk [vmem:[%s12 + $0x10] sm:$0xff] %vm928, %v926
    %932 = vst.msk [vmem:[%s12 + $0x18] sm:$0xff] %vm928, %v927
    // Predicated region
    $region62: #{tpu_custom_call.1} parent=1 // pred_check
      _
    $region63: #{tpu_custom_call.1} parent=1 // pred_check_branch
      %934 = sbr.rel (0) target = $region65
    $region64: #{tpu_custom_call.1} parent=1 // pred_region
      _
    $region65: #{tpu_custom_call.1} parent=1 // pred_fallthru
      _
    // Predicated region
    $region66: #{tpu_custom_call.1} parent=1 // pred_check
      _
    $region67: #{tpu_custom_call.1} parent=1 // pred_check_branch
      %936 = sbr.rel (0) target = $region69
    $region68: #{tpu_custom_call.1} parent=1 // pred_region
      _
    $region69: #{tpu_custom_call.1} parent=1 // pred_fallthru
      _
    %937 = vsyncpa [#allocation3], 1
    %938 = vsyncpa [#allocation5], 1

</llo_original>
